<compile_context>
chip_gen: v7x
topology: tpu7x:2x2x1
jax: 0.10.0
libtpu: 0.0.40
codegen_flags: <defaults>
</compile_context>

<pallas_src>
import jax
import jax.numpy as jnp
import numpy as np
from jax import lax
from jax.experimental import pallas as pl
from jax.experimental.pallas import tpu as pltpu


# ----------------------------- Pallas kernel ------------------------------- #

def _down_fused_kernel(x_ref, w1_ref, b1_ref, w2_ref, b2_ref, o_ref,
                       p1_ref, p2_ref):
    # x_ref : (H0, W0, Cin)   one batch element, NHWC
    # w1_ref: (9*Cin, C1)     conv1 weights, tap order (ky,kx,ci), BN1 scale folded
    # b1_ref: (1, C1)         conv1 bias + BN1 folded
    # w2_ref: (C1, 9*C1)      conv2 weights, channel-major, BN2 scale folded
    # b2_ref: (C1, 1)         conv2 bias + BN2 folded
    # o_ref : (C1, H*W)       channel-major output for this batch element
    # p1_ref: (H+2, W+2, Cin) VMEM scratch, zero-padded pooled input
    # p2_ref: (H+2, W+2, C1)  VMEM scratch, zero-padded conv1 activation
    h0, w0, cin = x_ref.shape
    h, w = h0 // 2, w0 // 2
    c1 = p2_ref.shape[-1]

    # ---- MaxPool2d(2): (H0, W0, Cin) -> (H, W, Cin) --------------------------
    # W axis (sublanes): two strided ref loads; H axis (leading): free reshape.
    m = jnp.maximum(x_ref[:, pl.ds(0, w, 2), :],
                    x_ref[:, pl.ds(1, w, 2), :])               # (H0, W, Cin)
    m = m.reshape(h, 2, w, cin)
    pooled = jnp.maximum(m[:, 0], m[:, 1])                     # (H, W, Cin)

    # ---- zero-padded pooled activation, resident in VMEM ---------------------
    p1_ref[...] = jnp.zeros_like(p1_ref)
    p1_ref[1:h + 1, 1:w + 1, :] = pooled

    # ---- conv1 + folded BN + LeakyReLU: one MXU matmul, K = 9*Cin -------------
    taps = [p1_ref[ky:ky + h, kx:kx + w, :]
            for ky in range(3) for kx in range(3)]             # 9 x (H, W, Cin)
    xcol = jnp.concatenate(taps, axis=-1).reshape(h * w, 9 * cin)
    y1 = jnp.dot(xcol, w1_ref[...], preferred_element_type=jnp.float32)
    y1 = y1 + b1_ref[...]                                      # (H*W, C1)
    y1 = jnp.where(y1 >= 0, y1, jnp.float32(0.01) * y1)        # LeakyReLU(0.01)

    # ---- conv1 activation zero-padded, stays in VMEM (no HBM round-trip) -----
    p2_ref[...] = jnp.zeros_like(p2_ref)
    p2_ref[1:h + 1, 1:w + 1, :] = y1.reshape(h, w, c1)

    # ---- conv2 + folded BN + LeakyReLU, channel-major output -----------------
    taps = [p2_ref[ky:ky + h, kx:kx + w, :]
            for ky in range(3) for kx in range(3)]             # 9 x (H, W, C1)
    xcol = jnp.concatenate(taps, axis=-1).reshape(h * w, 9 * c1)
    y2 = lax.dot_general(w2_ref[...], xcol,
                         dimension_numbers=(((1,), (1,)), ((), ())),
                         preferred_element_type=jnp.float32)   # (C1, H*W)
    y2 = y2 + b2_ref[...]
    y2 = jnp.where(y2 >= 0, y2, jnp.float32(0.01) * y2)
    o_ref[...] = y2.astype(o_ref.dtype)


# ------------------------------ wrappers ----------------------------------- #

def prepare_down_params(params, eps=1e-5):
    """Fold conv bias + eval-mode BN into the conv weights once, outside jit."""
    w1, b1, bn1 = params["w1"], params["b1"], params["bn1"]
    w2, b2, bn2 = params["w2"], params["b2"], params["bn2"]
    c1, cin = w1.shape[0], w1.shape[1]
    s1 = bn1["gamma"] / jnp.sqrt(bn1["var"] + eps)
    s2 = bn2["gamma"] / jnp.sqrt(bn2["var"] + eps)
    # conv1: rows ordered (ky, kx, ci) to match the kernel's tap concatenation.
    w1f = jnp.transpose(w1, (2, 3, 1, 0)).reshape(9 * cin, c1) * s1[None, :]
    b1f = ((b1 - bn1["mean"]) * s1 + bn1["beta"]).reshape(1, c1)
    # conv2: channel-major (C1, 9*C1) so the kernel emits (C1, H*W) directly.
    w2f = jnp.transpose(w2, (0, 2, 3, 1)).reshape(c1, 9 * c1) * s2[:, None]
    b2f = ((b2 - bn2["mean"]) * s2 + bn2["beta"]).reshape(c1, 1)
    return dict(w1f=w1f, b1f=b1f, w2f=w2f, b2f=b2f)


@jax.jit
def down_forward(x_nchw, folded):
    n, cin, h0, w0 = x_nchw.shape
    h0e, w0e = 2 * (h0 // 2), 2 * (w0 // 2)      # MaxPool2d(2) floor behaviour
    h, w = h0 // 2, w0 // 2
    c1 = folded["w1f"].shape[1]

    # Only layout glue outside the kernel: NCHW -> NHWC on the input.
    x = jnp.transpose(x_nchw, (0, 2, 3, 1)).astype(jnp.float32)
    x = x[:, :h0e, :w0e, :]

    flops = 2 * n * h * w * (9 * cin * c1 + 9 * c1 * c1)
    bytes_accessed = 4 * (n * h0e * w0e * cin + 9 * cin * c1 + c1
                          + 9 * c1 * c1 + c1 + n * c1 * h * w)

    out_cm = pl.pallas_call(
        _down_fused_kernel,
        out_shape=jax.ShapeDtypeStruct((n, c1, h * w), jnp.float32),
        grid=(n,),
        in_specs=[
            pl.BlockSpec((None, h0e, w0e, cin), lambda b: (b, 0, 0, 0)),
            pl.BlockSpec((9 * cin, c1), lambda b: (0, 0)),
            pl.BlockSpec((1, c1), lambda b: (0, 0)),
            pl.BlockSpec((c1, 9 * c1), lambda b: (0, 0)),
            pl.BlockSpec((c1, 1), lambda b: (0, 0)),
        ],
        out_specs=pl.BlockSpec((None, c1, h * w), lambda b: (b, 0, 0)),
        scratch_shapes=[
            pltpu.VMEM((h + 2, w + 2, cin), jnp.float32),
            pltpu.VMEM((h + 2, w + 2, c1), jnp.float32),
        ],
        compiler_params=pltpu.CompilerParams(
            dimension_semantics=("parallel",)),
        cost_estimate=pl.CostEstimate(
            flops=flops, transcendentals=0, bytes_accessed=bytes_accessed),
    )(x, folded["w1f"], folded["b1f"], folded["w2f"], folded["b2f"])

    # Channel-major kernel output: NCHW is just a reshape (no transpose).
    return out_cm.reshape(n, c1, h, w)


# ------------------------- deterministic parameters ------------------------ #

def init_down_params(key, in_channels, out_channels):
    ks = jax.random.split(key, 12)

    def bn(k1, k2, k3, k4, c):
        return dict(
            gamma=1.0 + 0.1 * jax.random.normal(k1, (c,), jnp.float32),
            beta=0.1 * jax.random.normal(k2, (c,), jnp.float32),
            mean=0.1 * jax.random.normal(k3, (c,), jnp.float32),
            var=1.0 + 0.5 * jax.random.uniform(k4, (c,), jnp.float32),
        )

    return dict(
        w1=0.1 * jax.random.normal(ks[0], (out_channels, in_channels, 3, 3), jnp.float32),
        b1=0.1 * jax.random.normal(ks[1], (out_channels,), jnp.float32),
        bn1=bn(ks[2], ks[3], ks[4], ks[5], out_channels),
        w2=0.1 * jax.random.normal(ks[6], (out_channels, out_channels, 3, 3), jnp.float32),
        b2=0.1 * jax.random.normal(ks[7], (out_channels,), jnp.float32),
        bn2=bn(ks[8], ks[9], ks[10], ks[11], out_channels),
    )


# ------------------------------ reference ---------------------------------- #

def _reference(x, p, eps=1e-5):
    def conv_bn_lrelu(x, w, b, bn):
        y = jax.lax.conv_general_dilated(
            x, w, window_strides=(1, 1), padding=((1, 1), (1, 1)),
            dimension_numbers=("NCHW", "OIHW", "NCHW"))
        y = y + b[None, :, None, None]
        y = (y - bn["mean"][None, :, None, None]) * (
            bn["gamma"][None, :, None, None]
            / jnp.sqrt(bn["var"][None, :, None, None] + eps)
        ) + bn["beta"][None, :, None, None]
        return jnp.where(y >= 0, y, 0.01 * y)

    x = jax.lax.reduce_window(x, -jnp.inf, jax.lax.max,
                              (1, 1, 2, 2), (1, 1, 2, 2), "VALID")
    x = conv_bn_lrelu(x, p["w1"], p["b1"], p["bn1"])
    x = conv_bn_lrelu(x, p["w2"], p["b2"], p["bn2"])
    return x


# --------------------------------- main ------------------------------------ #

if __name__ == "__main__":
    key = jax.random.PRNGKey(0)
    kx, kp = jax.random.split(key)
    x = jax.random.normal(kx, (2, 4, 16, 16), jnp.float32)   # NCHW, like PyTorch
    params = init_down_params(kp, in_channels=4, out_channels=8)
    folded = prepare_down_params(params)

    out = down_forward(x, folded)
    out = jax.block_until_ready(out)

    ref = _reference(x, params)
    np.testing.assert_allclose(np.asarray(out), np.asarray(ref),
                               rtol=1e-4, atol=1e-4)
    print("KERNEL_OK")
</pallas_src>

<mosaic_0001>
module attributes {stable_mosaic.version = 11 : i64} {
  func.func @_down_fused_kernel(%arg0: i32, %arg1: memref<1x16x16x4xf32, #tpu.memory_space<vmem>>, %arg2: memref<36x8xf32, #tpu.memory_space<vmem>>, %arg3: memref<1x8xf32, #tpu.memory_space<vmem>>, %arg4: memref<8x72xf32, #tpu.memory_space<vmem>>, %arg5: memref<8x1xf32, #tpu.memory_space<vmem>>, %arg6: memref<1x8x64xf32, #tpu.memory_space<vmem>>, %arg7: memref<10x10x4xf32, #tpu.memory_space<vmem>>, %arg8: memref<10x10x8xf32, #tpu.memory_space<vmem>>) attributes {dimension_semantics = [#tpu.dimension_semantics<parallel>], iteration_bounds = array<i64: 2>, scalar_prefetch = 0 : i64, scratch_operands = 2 : i64, tpu.core_type = #tpu.core_type<tc>, window_params = [{transform_indices = @transform_0, window_bounds = array<i64: 1, 16, 16, 4>}, {pipeline_mode = #tpu.pipeline_mode<synchronous>, transform_indices = @transform_1, window_bounds = array<i64: 36, 8>}, {pipeline_mode = #tpu.pipeline_mode<synchronous>, transform_indices = @transform_2, window_bounds = array<i64: 1, 8>}, {pipeline_mode = #tpu.pipeline_mode<synchronous>, transform_indices = @transform_3, window_bounds = array<i64: 8, 72>}, {pipeline_mode = #tpu.pipeline_mode<synchronous>, transform_indices = @transform_4, window_bounds = array<i64: 8, 1>}, {transform_indices = @transform_5, window_bounds = array<i64: 1, 8, 64>}]} {
    %c0 = arith.constant 0 : index
    %c0_0 = arith.constant 0 : index
    %c0_1 = arith.constant 0 : index
    %c0_2 = arith.constant 0 : index
    %0 = tpu.strided_load %arg1[%c0, %c0_0, %c0_1, %c0_2] {strides = array<i32: 1, 1, 2, 1>} : memref<1x16x16x4xf32, #tpu.memory_space<vmem>>, vector<1x16x8x4xf32>
    %1 = vector.shape_cast %0 : vector<1x16x8x4xf32> to vector<16x8x4xf32>
    %c0_3 = arith.constant 0 : index
    %c0_4 = arith.constant 0 : index
    %c1 = arith.constant 1 : index
    %c0_5 = arith.constant 0 : index
    %2 = tpu.strided_load %arg1[%c0_3, %c0_4, %c1, %c0_5] {strides = array<i32: 1, 1, 2, 1>} : memref<1x16x16x4xf32, #tpu.memory_space<vmem>>, vector<1x16x8x4xf32>
    %3 = vector.shape_cast %2 : vector<1x16x8x4xf32> to vector<16x8x4xf32>
    %4 = arith.maximumf %1, %3 : vector<16x8x4xf32>
    %5 = vector.shape_cast %4 : vector<16x8x4xf32> to vector<8x2x8x4xf32>
    %6 = vector.extract_strided_slice %5 {offsets = [0, 0, 0, 0], sizes = [8, 1, 8, 4], strides = [1, 1, 1, 1]} : vector<8x2x8x4xf32> to vector<8x1x8x4xf32>
    %7 = vector.shape_cast %6 : vector<8x1x8x4xf32> to vector<8x8x4xf32>
    %8 = vector.extract_strided_slice %5 {offsets = [0, 1, 0, 0], sizes = [8, 1, 8, 4], strides = [1, 1, 1, 1]} : vector<8x2x8x4xf32> to vector<8x1x8x4xf32>
    %9 = vector.shape_cast %8 : vector<8x1x8x4xf32> to vector<8x8x4xf32>
    %10 = arith.maximumf %7, %9 : vector<8x8x4xf32>
    %cst = arith.constant 0.000000e+00 : f32
    %11 = vector.broadcast %cst : f32 to vector<10x10x4xf32>
    %c0_6 = arith.constant 0 : index
    %c0_7 = arith.constant 0 : index
    %c0_8 = arith.constant 0 : index
    %12 = vector.load %arg7[%c0_6, %c0_7, %c0_8] : memref<10x10x4xf32, #tpu.memory_space<vmem>>, vector<10x10x4xf32>
    tpu.vector_store %arg7[%c0_6, %c0_7, %c0_8], %11 {strides = array<i32>} : memref<10x10x4xf32, #tpu.memory_space<vmem>>, vector<10x10x4xf32>,
    %c1_9 = arith.constant 1 : index
    %c1_10 = arith.constant 1 : index
    %c0_11 = arith.constant 0 : index
    %13 = vector.load %arg7[%c1_9, %c1_10, %c0_11] : memref<10x10x4xf32, #tpu.memory_space<vmem>>, vector<8x8x4xf32>
    tpu.vector_store %arg7[%c1_9, %c1_10, %c0_11], %10 {strides = array<i32>} : memref<10x10x4xf32, #tpu.memory_space<vmem>>, vector<8x8x4xf32>,
    %c0_12 = arith.constant 0 : index
    %c0_13 = arith.constant 0 : index
    %c0_14 = arith.constant 0 : index
    %14 = vector.load %arg7[%c0_12, %c0_13, %c0_14] : memref<10x10x4xf32, #tpu.memory_space<vmem>>, vector<8x8x4xf32>
    %c0_15 = arith.constant 0 : index
    %c1_16 = arith.constant 1 : index
    %c0_17 = arith.constant 0 : index
    %15 = vector.load %arg7[%c0_15, %c1_16, %c0_17] : memref<10x10x4xf32, #tpu.memory_space<vmem>>, vector<8x8x4xf32>
    %c0_18 = arith.constant 0 : index
    %c2 = arith.constant 2 : index
    %c0_19 = arith.constant 0 : index
    %16 = vector.load %arg7[%c0_18, %c2, %c0_19] : memref<10x10x4xf32, #tpu.memory_space<vmem>>, vector<8x8x4xf32>
    %c1_20 = arith.constant 1 : index
    %c0_21 = arith.constant 0 : index
    %c0_22 = arith.constant 0 : index
    %17 = vector.load %arg7[%c1_20, %c0_21, %c0_22] : memref<10x10x4xf32, #tpu.memory_space<vmem>>, vector<8x8x4xf32>
    %c1_23 = arith.constant 1 : index
    %c1_24 = arith.constant 1 : index
    %c0_25 = arith.constant 0 : index
    %18 = vector.load %arg7[%c1_23, %c1_24, %c0_25] : memref<10x10x4xf32, #tpu.memory_space<vmem>>, vector<8x8x4xf32>
    %c1_26 = arith.constant 1 : index
    %c2_27 = arith.constant 2 : index
    %c0_28 = arith.constant 0 : index
    %19 = vector.load %arg7[%c1_26, %c2_27, %c0_28] : memref<10x10x4xf32, #tpu.memory_space<vmem>>, vector<8x8x4xf32>
    %c2_29 = arith.constant 2 : index
    %c0_30 = arith.constant 0 : index
    %c0_31 = arith.constant 0 : index
    %20 = vector.load %arg7[%c2_29, %c0_30, %c0_31] : memref<10x10x4xf32, #tpu.memory_space<vmem>>, vector<8x8x4xf32>
    %c2_32 = arith.constant 2 : index
    %c1_33 = arith.constant 1 : index
    %c0_34 = arith.constant 0 : index
    %21 = vector.load %arg7[%c2_32, %c1_33, %c0_34] : memref<10x10x4xf32, #tpu.memory_space<vmem>>, vector<8x8x4xf32>
    %c2_35 = arith.constant 2 : index
    %c2_36 = arith.constant 2 : index
    %c0_37 = arith.constant 0 : index
    %22 = vector.load %arg7[%c2_35, %c2_36, %c0_37] : memref<10x10x4xf32, #tpu.memory_space<vmem>>, vector<8x8x4xf32>
    %23 = tpu.concatenate %14, %15, %16, %17, %18, %19, %20, %21, %22 in 2 : vector<8x8x4xf32>, vector<8x8x4xf32>, vector<8x8x4xf32>, vector<8x8x4xf32>, vector<8x8x4xf32>, vector<8x8x4xf32>, vector<8x8x4xf32>, vector<8x8x4xf32>, vector<8x8x4xf32> -> vector<8x8x36xf32>
    %24 = vector.shape_cast %23 : vector<8x8x36xf32> to vector<64x36xf32>
    %c0_38 = arith.constant 0 : index
    %c0_39 = arith.constant 0 : index
    %25 = vector.load %arg2[%c0_38, %c0_39] : memref<36x8xf32, #tpu.memory_space<vmem>>, vector<36x8xf32>
    %cst_40 = arith.constant dense<0.000000e+00> : vector<64x8xf32>
    %26 = tpu.matmul %24, %25, %cst_40 {dimension_numbers = #tpu.dot_dimension_numbers<[1], [0], [0], [1], [0, 0, 1, 1], [], []>} : vector<64x36xf32>, vector<36x8xf32>, vector<64x8xf32> -> vector<64x8xf32>
    %c0_41 = arith.constant 0 : index
    %c0_42 = arith.constant 0 : index
    %27 = vector.load %arg3[%c0_41, %c0_42] : memref<1x8xf32, #tpu.memory_space<vmem>>, vector<1x8xf32>
    %28 = vector.broadcast %27 : vector<1x8xf32> to vector<64x8xf32>
    %29 = arith.addf %26, %28 : vector<64x8xf32>
    %cst_43 = arith.constant 0.000000e+00 : f32
    %30 = vector.broadcast %cst_43 : f32 to vector<64x8xf32>
    %31 = arith.cmpf oge, %29, %30 : vector<64x8xf32>
    %cst_44 = arith.constant 0.00999999977 : f32
    %32 = vector.broadcast %cst_44 : f32 to vector<64x8xf32>
    %33 = arith.mulf %32, %29 : vector<64x8xf32>
    %34 = arith.select %31, %29, %33 : vector<64x8xi1>, vector<64x8xf32>
    %cst_45 = arith.constant 0.000000e+00 : f32
    %35 = vector.broadcast %cst_45 : f32 to vector<10x10x8xf32>
    %c0_46 = arith.constant 0 : index
    %c0_47 = arith.constant 0 : index
    %c0_48 = arith.constant 0 : index
    %36 = vector.load %arg8[%c0_46, %c0_47, %c0_48] : memref<10x10x8xf32, #tpu.memory_space<vmem>>, vector<10x10x8xf32>
    tpu.vector_store %arg8[%c0_46, %c0_47, %c0_48], %35 {strides = array<i32>} : memref<10x10x8xf32, #tpu.memory_space<vmem>>, vector<10x10x8xf32>,
    %37 = vector.shape_cast %34 : vector<64x8xf32> to vector<8x8x8xf32>
    %c1_49 = arith.constant 1 : index
    %c1_50 = arith.constant 1 : index
    %c0_51 = arith.constant 0 : index
    %38 = vector.load %arg8[%c1_49, %c1_50, %c0_51] : memref<10x10x8xf32, #tpu.memory_space<vmem>>, vector<8x8x8xf32>
    tpu.vector_store %arg8[%c1_49, %c1_50, %c0_51], %37 {strides = array<i32>} : memref<10x10x8xf32, #tpu.memory_space<vmem>>, vector<8x8x8xf32>,
    %c0_52 = arith.constant 0 : index
    %c0_53 = arith.constant 0 : index
    %c0_54 = arith.constant 0 : index
    %39 = vector.load %arg8[%c0_52, %c0_53, %c0_54] : memref<10x10x8xf32, #tpu.memory_space<vmem>>, vector<8x8x8xf32>
    %c0_55 = arith.constant 0 : index
    %c1_56 = arith.constant 1 : index
    %c0_57 = arith.constant 0 : index
    %40 = vector.load %arg8[%c0_55, %c1_56, %c0_57] : memref<10x10x8xf32, #tpu.memory_space<vmem>>, vector<8x8x8xf32>
    %c0_58 = arith.constant 0 : index
    %c2_59 = arith.constant 2 : index
    %c0_60 = arith.constant 0 : index
    %41 = vector.load %arg8[%c0_58, %c2_59, %c0_60] : memref<10x10x8xf32, #tpu.memory_space<vmem>>, vector<8x8x8xf32>
    %c1_61 = arith.constant 1 : index
    %c0_62 = arith.constant 0 : index
    %c0_63 = arith.constant 0 : index
    %42 = vector.load %arg8[%c1_61, %c0_62, %c0_63] : memref<10x10x8xf32, #tpu.memory_space<vmem>>, vector<8x8x8xf32>
    %c1_64 = arith.constant 1 : index
    %c1_65 = arith.constant 1 : index
    %c0_66 = arith.constant 0 : index
    %43 = vector.load %arg8[%c1_64, %c1_65, %c0_66] : memref<10x10x8xf32, #tpu.memory_space<vmem>>, vector<8x8x8xf32>
    %c1_67 = arith.constant 1 : index
    %c2_68 = arith.constant 2 : index
    %c0_69 = arith.constant 0 : index
    %44 = vector.load %arg8[%c1_67, %c2_68, %c0_69] : memref<10x10x8xf32, #tpu.memory_space<vmem>>, vector<8x8x8xf32>
    %c2_70 = arith.constant 2 : index
    %c0_71 = arith.constant 0 : index
    %c0_72 = arith.constant 0 : index
    %45 = vector.load %arg8[%c2_70, %c0_71, %c0_72] : memref<10x10x8xf32, #tpu.memory_space<vmem>>, vector<8x8x8xf32>
    %c2_73 = arith.constant 2 : index
    %c1_74 = arith.constant 1 : index
    %c0_75 = arith.constant 0 : index
    %46 = vector.load %arg8[%c2_73, %c1_74, %c0_75] : memref<10x10x8xf32, #tpu.memory_space<vmem>>, vector<8x8x8xf32>
    %c2_76 = arith.constant 2 : index
    %c2_77 = arith.constant 2 : index
    %c0_78 = arith.constant 0 : index
    %47 = vector.load %arg8[%c2_76, %c2_77, %c0_78] : memref<10x10x8xf32, #tpu.memory_space<vmem>>, vector<8x8x8xf32>
    %48 = tpu.concatenate %39, %40, %41, %42, %43, %44, %45, %46, %47 in 2 : vector<8x8x8xf32>, vector<8x8x8xf32>, vector<8x8x8xf32>, vector<8x8x8xf32>, vector<8x8x8xf32>, vector<8x8x8xf32>, vector<8x8x8xf32>, vector<8x8x8xf32>, vector<8x8x8xf32> -> vector<8x8x72xf32>
    %49 = vector.shape_cast %48 : vector<8x8x72xf32> to vector<64x72xf32>
    %c0_79 = arith.constant 0 : index
    %c0_80 = arith.constant 0 : index
    %50 = vector.load %arg4[%c0_79, %c0_80] : memref<8x72xf32, #tpu.memory_space<vmem>>, vector<8x72xf32>
    %cst_81 = arith.constant dense<0.000000e+00> : vector<8x64xf32>
    %51 = tpu.matmul %50, %49, %cst_81 {dimension_numbers = #tpu.dot_dimension_numbers<[1], [1], [0], [0], [0, 0, 1, 0], [], []>} : vector<8x72xf32>, vector<64x72xf32>, vector<8x64xf32> -> vector<8x64xf32>
    %c0_82 = arith.constant 0 : index
    %c0_83 = arith.constant 0 : index
    %52 = vector.load %arg5[%c0_82, %c0_83] : memref<8x1xf32, #tpu.memory_space<vmem>>, vector<8x1xf32>
    %53 = vector.broadcast %52 : vector<8x1xf32> to vector<8x64xf32>
    %54 = arith.addf %51, %53 : vector<8x64xf32>
    %cst_84 = arith.constant 0.000000e+00 : f32
    %55 = vector.broadcast %cst_84 : f32 to vector<8x64xf32>
    %56 = arith.cmpf oge, %54, %55 : vector<8x64xf32>
    %cst_85 = arith.constant 0.00999999977 : f32
    %57 = vector.broadcast %cst_85 : f32 to vector<8x64xf32>
    %58 = arith.mulf %57, %54 : vector<8x64xf32>
    %59 = arith.select %56, %54, %58 : vector<8x64xi1>, vector<8x64xf32>
    %c0_86 = arith.constant 0 : index
    %c0_87 = arith.constant 0 : index
    %c0_88 = arith.constant 0 : index
    %60 = vector.load %arg6[%c0_86, %c0_87, %c0_88] : memref<1x8x64xf32, #tpu.memory_space<vmem>>, vector<1x8x64xf32>
    %61 = vector.shape_cast %60 : vector<1x8x64xf32> to vector<8x64xf32>
    %62 = vector.shape_cast %59 : vector<8x64xf32> to vector<1x8x64xf32>
    tpu.vector_store %arg6[%c0_86, %c0_87, %c0_88], %62 {strides = array<i32>} : memref<1x8x64xf32, #tpu.memory_space<vmem>>, vector<1x8x64xf32>,
    return
  }
  func.func @transform_0(%arg0: i32) -> (i32, i32, i32, i32) {
    %c0_i32 = arith.constant 0 : i32
    %c0_i32_0 = arith.constant 0 : i32
    %c0_i32_1 = arith.constant 0 : i32
    %c0_i32_2 = arith.constant 0 : i32
    return %arg0, %c0_i32, %c0_i32_0, %c0_i32_1 : i32, i32, i32, i32
  }
  func.func @transform_1(%arg0: i32) -> (i32, i32) {
    %c0_i32 = arith.constant 0 : i32
    %c0_i32_0 = arith.constant 0 : i32
    %c0_i32_1 = arith.constant 0 : i32
    return %c0_i32, %c0_i32_0 : i32, i32
  }
  func.func @transform_2(%arg0: i32) -> (i32, i32) {
    %c0_i32 = arith.constant 0 : i32
    %c0_i32_0 = arith.constant 0 : i32
    %c0_i32_1 = arith.constant 0 : i32
    return %c0_i32, %c0_i32_0 : i32, i32
  }
  func.func @transform_3(%arg0: i32) -> (i32, i32) {
    %c0_i32 = arith.constant 0 : i32
    %c0_i32_0 = arith.constant 0 : i32
    %c0_i32_1 = arith.constant 0 : i32
    return %c0_i32, %c0_i32_0 : i32, i32
  }
  func.func @transform_4(%arg0: i32) -> (i32, i32) {
    %c0_i32 = arith.constant 0 : i32
    %c0_i32_0 = arith.constant 0 : i32
    %c0_i32_1 = arith.constant 0 : i32
    return %c0_i32, %c0_i32_0 : i32, i32
  }
  func.func @transform_5(%arg0: i32) -> (i32, i32, i32) {
    %c0_i32 = arith.constant 0 : i32
    %c0_i32_0 = arith.constant 0 : i32
    %c0_i32_1 = arith.constant 0 : i32
    return %arg0, %c0_i32, %c0_i32_0 : i32, i32, i32
  }
}

</mosaic_0001>

<llo_original>
// kernel: down_forward.1
$region0: #{down_forward.1}
  #allocation0 [shape = 'u32[]', space=smem, size = 0x4, offset = 0x4, fixed_abs, tag = 'smem constant byte address 0x4 - core index']
  #allocation1 [shape = 'u32[144,128]{1,0:T(1,128)}', space=vmem, size = 0x12000, scoped, tag = 'internal scratch']
  #allocation2 [shape = 'f32[10,10,4]{2,1,0:T(8,128)}', space=vmem, size = 0x14000, scoped, tag = 'scratch operand']
  #allocation3 [shape = 'f32[10,10,8]{2,1,0:T(8,128)}', space=vmem, size = 0x14000, scoped, tag = 'scratch operand']
  %s0 = inlined_call_operand.vmem [shape: f32[2,16,16,4], index: 0, kind: input, shape index: {}]
  %s1 = inlined_call_operand.vmem [shape: f32[36,8], index: 1, kind: input, shape index: {}]
  %s2 = inlined_call_operand.vmem [shape: f32[1,8], index: 2, kind: input, shape index: {}]
  %s3 = inlined_call_operand.vmem [shape: f32[8,72], index: 3, kind: input, shape index: {}]
  %s4 = inlined_call_operand.vmem [shape: f32[8,1], index: 4, kind: input, shape index: {}]
  %s5 = inlined_call_operand.vmem [shape: f32[2,8,64], index: 5, kind: output, shape index: {}]
  %s6 = sld [smem:[#allocation0]]
  $region53: #{down_forward.1} parent=0
    _
  %s8 = ssub.s32 1, %s6
  %s9 = scalar_select 0, %s8, %s6
  loop: start=0, step=1, limit=4
  $region2: #{down_forward.1} parent=0 // loop_pre_header
    _
  $region3: #{down_forward.1} parent=0 // loop_header
    %s11 = sphi 0, %s15
    %p12 = scmp.ge.s32.totalorder %s11, 4
    %s21 = sphi 0, %s23
    %s24 = sphi 0, %s21
    %s25 = sphi 0, %s24
    %s41 = sphi 0, %s25
    %s45 = sphi 0, %s45
    %s47 = sphi 0, %s45
    %s48 = sphi 0, %s47
    %s62 = sphi 0, %s48
    %s66 = sphi 0, %s66
    %s68 = sphi 0, %s66
    %s69 = sphi 0, %s68
    %s83 = sphi 0, %s69
    %s87 = sphi 0, %s87
    %s89 = sphi 0, %s87
    %s90 = sphi 0, %s89
    %s104 = sphi 0, %s90
    %s108 = sphi 0, %s108
    %s110 = sphi 0, %s108
    %s111 = sphi 0, %s110
    %s125 = sphi 0, %s111
    %s131 = sphi 0, %s133
    %s134 = sphi 0, %s131
    %s135 = sphi 0, %s134
    %s151 = sphi 0, %s135
  $region4: #{down_forward.1} parent=0 // loop_header_branch
    %14 = sbr.rel (%p12) target = $region8
  $region5: #{down_forward.1} parent=0 // loop_body
    %s16 = ssub.s32 %s11, 1
    %s17 = ssub.s32 %s11, 2
    %s18 = sadd.s32 %s11, 1
    %s19 = ssub.s32 %s11, %s18
    %p20 = scmp.eq.s32.totalorder %s19, 0
    %s22 = sadd.s32 %s21, 1
    %s23 = scalar_select %p20, %s21, %s22
    %p26 = pneg %p20
    %p27 = scmp.eq.s32.totalorder %s11, 1
    %p28 = por %p26, %p27
    %p29 = scmp.ne.s32.totalorder %s21, %s24
    %p30 = scmp.eq.s32.totalorder %s11, 0
    %p31 = por %p29, %p30
    %p32 = scmp.ne.s32.totalorder %s21, %s24
    %p33 = scmp.eq.s32.totalorder %s16, 1
    %p34 = por %p32, %p33
    %p35 = scmp.ne.s32.totalorder %s24, %s25
    %p36 = scmp.eq.s32.totalorder %s16, 0
    %p37 = por %p35, %p36
    %p38 = scmp.ne.s32.totalorder %s24, %s25
    %p39 = scmp.eq.s32.totalorder %s17, 1
    %p40 = por %p38, %p39
    %p42 = scmp.ne.s32.totalorder %s25, %s41
    %p43 = scmp.eq.s32.totalorder %s17, 0
    %p44 = por %p42, %p43
    %s46 = sadd.s32 %s45, 1
    %p49 = scmp.eq.s32.totalorder %s11, 1
    %p50 = scmp.ne.s32.totalorder %s45, %s47
    %p51 = scmp.eq.s32.totalorder %s11, 0
    %p52 = por %p50, %p51
    %p53 = scmp.ne.s32.totalorder %s45, %s47
    %p54 = scmp.eq.s32.totalorder %s16, 1
    %p55 = por %p53, %p54
    %p56 = scmp.ne.s32.totalorder %s47, %s48
    %p57 = scmp.eq.s32.totalorder %s16, 0
    %p58 = por %p56, %p57
    %p59 = scmp.ne.s32.totalorder %s47, %s48
    %p60 = scmp.eq.s32.totalorder %s17, 1
    %p61 = por %p59, %p60
    %p63 = scmp.ne.s32.totalorder %s48, %s62
    %p64 = scmp.eq.s32.totalorder %s17, 0
    %p65 = por %p63, %p64
    %s67 = sadd.s32 %s66, 1
    %p70 = scmp.eq.s32.totalorder %s11, 1
    %p71 = scmp.ne.s32.totalorder %s66, %s68
    %p72 = scmp.eq.s32.totalorder %s11, 0
    %p73 = por %p71, %p72
    %p74 = scmp.ne.s32.totalorder %s66, %s68
    %p75 = scmp.eq.s32.totalorder %s16, 1
    %p76 = por %p74, %p75
    %p77 = scmp.ne.s32.totalorder %s68, %s69
    %p78 = scmp.eq.s32.totalorder %s16, 0
    %p79 = por %p77, %p78
    %p80 = scmp.ne.s32.totalorder %s68, %s69
    %p81 = scmp.eq.s32.totalorder %s17, 1
    %p82 = por %p80, %p81
    %p84 = scmp.ne.s32.totalorder %s69, %s83
    %p85 = scmp.eq.s32.totalorder %s17, 0
    %p86 = por %p84, %p85
    %s88 = sadd.s32 %s87, 1
    %p91 = scmp.eq.s32.totalorder %s11, 1
    %p92 = scmp.ne.s32.totalorder %s87, %s89
    %p93 = scmp.eq.s32.totalorder %s11, 0
    %p94 = por %p92, %p93
    %p95 = scmp.ne.s32.totalorder %s87, %s89
    %p96 = scmp.eq.s32.totalorder %s16, 1
    %p97 = por %p95, %p96
    %p98 = scmp.ne.s32.totalorder %s89, %s90
    %p99 = scmp.eq.s32.totalorder %s16, 0
    %p100 = por %p98, %p99
    %p101 = scmp.ne.s32.totalorder %s89, %s90
    %p102 = scmp.eq.s32.totalorder %s17, 1
    %p103 = por %p101, %p102
    %p105 = scmp.ne.s32.totalorder %s90, %s104
    %p106 = scmp.eq.s32.totalorder %s17, 0
    %p107 = por %p105, %p106
    %s109 = sadd.s32 %s108, 1
    %p112 = scmp.eq.s32.totalorder %s11, 1
    %p113 = scmp.ne.s32.totalorder %s108, %s110
    %p114 = scmp.eq.s32.totalorder %s11, 0
    %p115 = por %p113, %p114
    %p116 = scmp.ne.s32.totalorder %s108, %s110
    %p117 = scmp.eq.s32.totalorder %s16, 1
    %p118 = por %p116, %p117
    %p119 = scmp.ne.s32.totalorder %s110, %s111
    %p120 = scmp.eq.s32.totalorder %s16, 0
    %p121 = por %p119, %p120
    %p122 = scmp.ne.s32.totalorder %s110, %s111
    %p123 = scmp.eq.s32.totalorder %s17, 1
    %p124 = por %p122, %p123
    %p126 = scmp.ne.s32.totalorder %s111, %s125
    %p127 = scmp.eq.s32.totalorder %s17, 0
    %p128 = por %p126, %p127
    %s129 = ssub.s32 %s11, %s18
    %p130 = scmp.eq.s32.totalorder %s129, 0
    %s132 = sadd.s32 %s131, 1
    %s133 = scalar_select %p130, %s131, %s132
    %p136 = pneg %p130
    %p137 = scmp.eq.s32.totalorder %s11, 1
    %p138 = por %p136, %p137
    %p139 = scmp.ne.s32.totalorder %s131, %s134
    %p140 = scmp.eq.s32.totalorder %s11, 0
    %p141 = por %p139, %p140
    %p142 = scmp.ne.s32.totalorder %s131, %s134
    %p143 = scmp.eq.s32.totalorder %s16, 1
    %p144 = por %p142, %p143
    %p145 = scmp.ne.s32.totalorder %s134, %s135
    %p146 = scmp.eq.s32.totalorder %s16, 0
    %p147 = por %p145, %p146
    %p148 = scmp.ne.s32.totalorder %s134, %s135
    %p149 = scmp.eq.s32.totalorder %s17, 1
    %p150 = por %p148, %p149
    %p152 = scmp.ne.s32.totalorder %s135, %s151
    %p153 = scmp.eq.s32.totalorder %s17, 0
    %p154 = por %p152, %p153
    %p155 = scmp.le.s32.totalorder 1, %s11
    %p156 = scmp.lt.s32.totalorder %s11, 3
    %p157 = pnand %p155, %p156
    %p158 = pneg %p157
    // Predicated region
    $region9: #{down_forward.1} parent=5 // pred_check
      _
    $region10: #{down_forward.1} parent=5 // pred_check_branch
      %160 = sbr.rel (%p157) target = $region12
    $region11: #{down_forward.1} parent=5 // pred_region
      %s161 = ssub.s32 %s11, 1
      // Predicated region
      $region13: #{down_forward.1} parent=11 // pred_check
        %p162 = pneg %p58
      $region14: #{down_forward.1} parent=11 // pred_check_branch
        %164 = sbr.rel (%p162) target = $region16
      $region15: #{down_forward.1} parent=11 // pred_region
        _
      $region16: #{down_forward.1} parent=11 // pred_fallthru
        _
      // Predicated region
      $region17: #{down_forward.1} parent=11 // pred_check
        %p165 = pneg %p79
      $region18: #{down_forward.1} parent=11 // pred_check_branch
        %167 = sbr.rel (%p165) target = $region20
      $region19: #{down_forward.1} parent=11 // pred_region
        _
      $region20: #{down_forward.1} parent=11 // pred_fallthru
        _
      // Predicated region
      $region21: #{down_forward.1} parent=11 // pred_check
        %p168 = pneg %p100
      $region22: #{down_forward.1} parent=11 // pred_check_branch
        %170 = sbr.rel (%p168) target = $region24
      $region23: #{down_forward.1} parent=11 // pred_region
        _
      $region24: #{down_forward.1} parent=11 // pred_fallthru
        _
      // Predicated region
      $region25: #{down_forward.1} parent=11 // pred_check
        %p171 = pneg %p121
      $region26: #{down_forward.1} parent=11 // pred_check_branch
        %173 = sbr.rel (%p171) target = $region28
      $region27: #{down_forward.1} parent=11 // pred_region
        _
      $region28: #{down_forward.1} parent=11 // pred_fallthru
        _
    $region12: #{down_forward.1} parent=5 // pred_fallthru
      _
    %p174 = scmp.lt.s32.totalorder %s11, 2
    // Predicated region
    $region29: #{down_forward.1} parent=5 // pred_check
      %p175 = pneg %p174
    $region30: #{down_forward.1} parent=5 // pred_check_branch
      %177 = sbr.rel (%p175) target = $region32
    $region31: #{down_forward.1} parent=5 // pred_region
      // Predicated region
      $region33: #{down_forward.1} parent=31 // pred_check
        %p178 = pneg %p31
      $region34: #{down_forward.1} parent=31 // pred_check_branch
        %180 = sbr.rel (%p178) target = $region36
      $region35: #{down_forward.1} parent=31 // pred_region
        %p181 = scmp.lt.s32.totalorder %s11, 1
        %s182 = scalar_select %p181, %s11, 1
        %s183 = smul.addr %s182, 32
        %s184 = smul.addr %s183, 8
        %s185 = scalar_lea.vmem %s0, %s184
      $region36: #{down_forward.1} parent=31 // pred_fallthru
        _
    $region32: #{down_forward.1} parent=5 // pred_fallthru
      _
    %p186 = scmp.le.s32.totalorder 1, %s11
    %p187 = scmp.lt.s32.totalorder %s11, 3
    %p188 = pnand %p186, %p187
    %p189 = pneg %p188
    // Predicated region
    $region37: #{down_forward.1} parent=5 // pred_check
      _
    $region38: #{down_forward.1} parent=5 // pred_check_branch
      %191 = sbr.rel (%p188) target = $region40
    $region39: #{down_forward.1} parent=5 // pred_region
      %s192 = ssub.s32 %s11, 1
      %p193 = scmp.lt.s32.totalorder %s16, 1
      %s194 = scalar_select %p193, %s16, 1
      %s195 = smul.addr %s194, 32
      %s196 = smul.addr %s195, 8
      %s197 = scalar_lea.vmem %s0, %s196
      %p198 = pneg %p37
      %p199 = pneg %p34
      %p200 = pneg %p58
      %p201 = pneg %p55
      %p202 = pneg %p79
      %p203 = pneg %p76
      %p204 = pneg %p100
      %p205 = pneg %p97
      %p206 = pneg %p121
      %p207 = pneg %p118
      %p208 = pneg %p147
      %p209 = pneg %p144
      %p210 = scmp.lt.s32.totalorder %s16, 1
      %s211 = scalar_select %p210, %s16, 1
      %s212 = smul.addr %s211, 8
      %s213 = scalar_lea.vmem %s5, %s212
      %p214 = scmp.lt.s32.totalorder %s16, 1
      %s215 = scalar_select %p214, %s16, 1
      %s216 = smul.addr %s215, 32
      %s217 = smul.addr %s216, 8
      %s218 = scalar_lea.vmem %s0, %s217
      %p219 = scmp.lt.s32.totalorder %s16, 1
      %s220 = scalar_select %p219, %s16, 1
      %s221 = smul.addr %s220, 8
      %s222 = scalar_lea.vmem %s5, %s221
      %v223 = vld [vmem:[%s218] ss:$2 sm:$0xff]
      %s224 = scalar_lea.vmem %s218, 16
      %v225 = vld [vmem:[%s224] ss:$2 sm:$0xff]
      %s226 = scalar_lea.vmem %s218, 32
      %v227 = vld [vmem:[%s226] ss:$2 sm:$0xff]
      %s228 = scalar_lea.vmem %s218, 48
      %v229 = vld [vmem:[%s228] ss:$2 sm:$0xff]
      %s230 = scalar_lea.vmem %s218, 64
      %v231 = vld [vmem:[%s230] ss:$2 sm:$0xff]
      %s232 = scalar_lea.vmem %s218, 80
      %v233 = vld [vmem:[%s232] ss:$2 sm:$0xff]
      %s234 = scalar_lea.vmem %s218, 96
      %v235 = vld [vmem:[%s234] ss:$2 sm:$0xff]
      %s236 = scalar_lea.vmem %s218, 112
      %v237 = vld [vmem:[%s236] ss:$2 sm:$0xff]
      %s238 = scalar_lea.vmem %s218, 128
      %v239 = vld [vmem:[%s238] ss:$2 sm:$0xff]
      %s240 = scalar_lea.vmem %s218, 144
      %v241 = vld [vmem:[%s240] ss:$2 sm:$0xff]
      %s242 = scalar_lea.vmem %s218, 160
      %v243 = vld [vmem:[%s242] ss:$2 sm:$0xff]
      %s244 = scalar_lea.vmem %s218, 176
      %v245 = vld [vmem:[%s244] ss:$2 sm:$0xff]
      %s246 = scalar_lea.vmem %s218, 192
      %v247 = vld [vmem:[%s246] ss:$2 sm:$0xff]
      %s248 = scalar_lea.vmem %s218, 208
      %v249 = vld [vmem:[%s248] ss:$2 sm:$0xff]
      %s250 = scalar_lea.vmem %s218, 224
      %v251 = vld [vmem:[%s250] ss:$2 sm:$0xff]
      %s252 = scalar_lea.vmem %s218, 240
      %v253 = vld [vmem:[%s252] ss:$2 sm:$0xff]
      %s254 = scalar_lea.vmem %s218, 1
      %v255 = vld [vmem:[%s254] ss:$2 sm:$0xff]
      %s256 = scalar_lea.vmem %s218, 17
      %v257 = vld [vmem:[%s256] ss:$2 sm:$0xff]
      %s258 = scalar_lea.vmem %s218, 33
      %v259 = vld [vmem:[%s258] ss:$2 sm:$0xff]
      %s260 = scalar_lea.vmem %s218, 49
      %v261 = vld [vmem:[%s260] ss:$2 sm:$0xff]
      %s262 = scalar_lea.vmem %s218, 65
      %v263 = vld [vmem:[%s262] ss:$2 sm:$0xff]
      %s264 = scalar_lea.vmem %s218, 81
      %v265 = vld [vmem:[%s264] ss:$2 sm:$0xff]
      %s266 = scalar_lea.vmem %s218, 97
      %v267 = vld [vmem:[%s266] ss:$2 sm:$0xff]
      %s268 = scalar_lea.vmem %s218, 113
      %v269 = vld [vmem:[%s268] ss:$2 sm:$0xff]
      %s270 = scalar_lea.vmem %s218, 129
      %v271 = vld [vmem:[%s270] ss:$2 sm:$0xff]
      %s272 = scalar_lea.vmem %s218, 145
      %v273 = vld [vmem:[%s272] ss:$2 sm:$0xff]
      %s274 = scalar_lea.vmem %s218, 161
      %v275 = vld [vmem:[%s274] ss:$2 sm:$0xff]
      %s276 = scalar_lea.vmem %s218, 177
      %v277 = vld [vmem:[%s276] ss:$2 sm:$0xff]
      %s278 = scalar_lea.vmem %s218, 193
      %v279 = vld [vmem:[%s278] ss:$2 sm:$0xff]
      %s280 = scalar_lea.vmem %s218, 209
      %v281 = vld [vmem:[%s280] ss:$2 sm:$0xff]
      %s282 = scalar_lea.vmem %s218, 225
      %v283 = vld [vmem:[%s282] ss:$2 sm:$0xff]
      %s284 = scalar_lea.vmem %s218, 241
      %v285 = vld [vmem:[%s284] ss:$2 sm:$0xff]
      %v286 = vmax.f32 %v223, %v255
      %v287 = vmax.f32 %v225, %v257
      %v288 = vmax.f32 %v227, %v259
      %v289 = vmax.f32 %v229, %v261
      %v290 = vmax.f32 %v231, %v263
      %v291 = vmax.f32 %v233, %v265
      %v292 = vmax.f32 %v235, %v267
      %v293 = vmax.f32 %v237, %v269
      %v294 = vmax.f32 %v239, %v271
      %v295 = vmax.f32 %v241, %v273
      %v296 = vmax.f32 %v243, %v275
      %v297 = vmax.f32 %v245, %v277
      %v298 = vmax.f32 %v247, %v279
      %v299 = vmax.f32 %v249, %v281
      %v300 = vmax.f32 %v251, %v283
      %v301 = vmax.f32 %v253, %v285
      %v302 = vmax.f32 %v286, %v287
      %v303 = vmax.f32 %v288, %v289
      %v304 = vmax.f32 %v290, %v291
      %v305 = vmax.f32 %v292, %v293
      %v306 = vmax.f32 %v294, %v295
      %v307 = vmax.f32 %v296, %v297
      %v308 = vmax.f32 %v298, %v299
      %v309 = vmax.f32 %v300, %v301
      %vm310 = vcmask 31744
      %311 = vst.msk [vmem:[#allocation2] sm:$0xff] %vm310, 0.0
      %vm312 = vcmask 25600
      %313 = vst.msk [vmem:[#allocation2 + $0x8] sm:$0x3] %vm312, 0.0
      %314 = vst.msk [vmem:[#allocation2 + $0x10] sm:$0xff] %vm310, 0.0
      %315 = vst.msk [vmem:[#allocation2 + $0x18] sm:$0x3] %vm312, 0.0
      %316 = vst.msk [vmem:[#allocation2 + $0x20] sm:$0xff] %vm310, 0.0
      %317 = vst.msk [vmem:[#allocation2 + $0x28] sm:$0x3] %vm312, 0.0
      %318 = vst.msk [vmem:[#allocation2 + $0x30] sm:$0xff] %vm310, 0.0
      %319 = vst.msk [vmem:[#allocation2 + $0x38] sm:$0x3] %vm312, 0.0
      %320 = vst.msk [vmem:[#allocation2 + $0x40] sm:$0xff] %vm310, 0.0
      %321 = vst.msk [vmem:[#allocation2 + $0x48] sm:$0x3] %vm312, 0.0
      %322 = vst.msk [vmem:[#allocation2 + $0x50] sm:$0xff] %vm310, 0.0
      %323 = vst.msk [vmem:[#allocation2 + $0x58] sm:$0x3] %vm312, 0.0
      %324 = vst.msk [vmem:[#allocation2 + $0x60] sm:$0xff] %vm310, 0.0
      %325 = vst.msk [vmem:[#allocation2 + $0x68] sm:$0x3] %vm312, 0.0
      %326 = vst.msk [vmem:[#allocation2 + $0x70] sm:$0xff] %vm310, 0.0
      %327 = vst.msk [vmem:[#allocation2 + $0x78] sm:$0x3] %vm312, 0.0
      %328 = vst.msk [vmem:[#allocation2 + $0x80] sm:$0xff] %vm310, 0.0
      %329 = vst.msk [vmem:[#allocation2 + $0x88] sm:$0x3] %vm312, 0.0
      %330 = vst.msk [vmem:[#allocation2 + $0x90] sm:$0xff] %vm310, 0.0
      %331 = vst.msk [vmem:[#allocation2 + $0x98] sm:$0x3] %vm312, 0.0
      %s332 = scalar_lea.vmem [#allocation2], 16
      %333 = vst.msk [vmem:[%s332 + $0x1] sm:$0xff] %vm310, %v302
      %334 = vst.msk [vmem:[%s332 + $0x11] sm:$0xff] %vm310, %v303
      %335 = vst.msk [vmem:[%s332 + $0x21] sm:$0xff] %vm310, %v304
      %336 = vst.msk [vmem:[%s332 + $0x31] sm:$0xff] %vm310, %v305
      %337 = vst.msk [vmem:[%s332 + $0x41] sm:$0xff] %vm310, %v306
      %338 = vst.msk [vmem:[%s332 + $0x51] sm:$0xff] %vm310, %v307
      %339 = vst.msk [vmem:[%s332 + $0x61] sm:$0xff] %vm310, %v308
      %340 = vst.msk [vmem:[%s332 + $0x71] sm:$0xff] %vm310, %v309
      %v341 = vld [vmem:[#allocation2] sm:$0xff]
      %v342 = vld [vmem:[#allocation2 + $0x10] sm:$0xff]
      %v343 = vld [vmem:[#allocation2 + $0x20] sm:$0xff]
      %v344 = vld [vmem:[#allocation2 + $0x30] sm:$0xff]
      %v345 = vld [vmem:[#allocation2 + $0x40] sm:$0xff]
      %v346 = vld [vmem:[#allocation2 + $0x50] sm:$0xff]
      %v347 = vld [vmem:[#allocation2 + $0x60] sm:$0xff]
      %v348 = vld [vmem:[#allocation2 + $0x70] sm:$0xff]
      %v349 = vld [vmem:[#allocation2 + $0x1] sm:$0xff]
      %v350 = vld [vmem:[#allocation2 + $0x11] sm:$0xff]
      %v351 = vld [vmem:[#allocation2 + $0x21] sm:$0xff]
      %v352 = vld [vmem:[#allocation2 + $0x31] sm:$0xff]
      %v353 = vld [vmem:[#allocation2 + $0x41] sm:$0xff]
      %v354 = vld [vmem:[#allocation2 + $0x51] sm:$0xff]
      %v355 = vld [vmem:[#allocation2 + $0x61] sm:$0xff]
      %v356 = vld [vmem:[#allocation2 + $0x71] sm:$0xff]
      %v357 = vld [vmem:[#allocation2 + $0x2] sm:$0xff]
      %v358 = vld [vmem:[#allocation2 + $0x12] sm:$0xff]
      %v359 = vld [vmem:[#allocation2 + $0x22] sm:$0xff]
      %v360 = vld [vmem:[#allocation2 + $0x32] sm:$0xff]
      %v361 = vld [vmem:[#allocation2 + $0x42] sm:$0xff]
      %v362 = vld [vmem:[#allocation2 + $0x52] sm:$0xff]
      %v363 = vld [vmem:[#allocation2 + $0x62] sm:$0xff]
      %v364 = vld [vmem:[#allocation2 + $0x72] sm:$0xff]
      %v365 = vld [vmem:[%s332] sm:$0xff]
      %v366 = vld [vmem:[%s332 + $0x10] sm:$0xff]
      %v367 = vld [vmem:[%s332 + $0x20] sm:$0xff]
      %v368 = vld [vmem:[%s332 + $0x30] sm:$0xff]
      %v369 = vld [vmem:[%s332 + $0x40] sm:$0xff]
      %v370 = vld [vmem:[%s332 + $0x50] sm:$0xff]
      %v371 = vld [vmem:[%s332 + $0x60] sm:$0xff]
      %v372 = vld [vmem:[%s332 + $0x70] sm:$0xff]
      %v373 = vld [vmem:[%s332 + $0x1] sm:$0xff]
      %v374 = vld [vmem:[%s332 + $0x11] sm:$0xff]
      %v375 = vld [vmem:[%s332 + $0x21] sm:$0xff]
      %v376 = vld [vmem:[%s332 + $0x31] sm:$0xff]
      %v377 = vld [vmem:[%s332 + $0x41] sm:$0xff]
      %v378 = vld [vmem:[%s332 + $0x51] sm:$0xff]
      %v379 = vld [vmem:[%s332 + $0x61] sm:$0xff]
      %v380 = vld [vmem:[%s332 + $0x71] sm:$0xff]
      %v381 = vld [vmem:[%s332 + $0x2] sm:$0xff]
      %v382 = vld [vmem:[%s332 + $0x12] sm:$0xff]
      %v383 = vld [vmem:[%s332 + $0x22] sm:$0xff]
      %v384 = vld [vmem:[%s332 + $0x32] sm:$0xff]
      %v385 = vld [vmem:[%s332 + $0x42] sm:$0xff]
      %v386 = vld [vmem:[%s332 + $0x52] sm:$0xff]
      %v387 = vld [vmem:[%s332 + $0x62] sm:$0xff]
      %v388 = vld [vmem:[%s332 + $0x72] sm:$0xff]
      %s389 = scalar_lea.vmem [#allocation2], 32
      %v390 = vld [vmem:[%s389] sm:$0xff]
      %v391 = vld [vmem:[%s389 + $0x10] sm:$0xff]
      %v392 = vld [vmem:[%s389 + $0x20] sm:$0xff]
      %v393 = vld [vmem:[%s389 + $0x30] sm:$0xff]
      %v394 = vld [vmem:[%s389 + $0x40] sm:$0xff]
      %v395 = vld [vmem:[%s389 + $0x50] sm:$0xff]
      %v396 = vld [vmem:[%s389 + $0x60] sm:$0xff]
      %v397 = vld [vmem:[%s389 + $0x70] sm:$0xff]
      %v398 = vld [vmem:[%s389 + $0x1] sm:$0xff]
      %v399 = vld [vmem:[%s389 + $0x11] sm:$0xff]
      %v400 = vld [vmem:[%s389 + $0x21] sm:$0xff]
      %v401 = vld [vmem:[%s389 + $0x31] sm:$0xff]
      %v402 = vld [vmem:[%s389 + $0x41] sm:$0xff]
      %v403 = vld [vmem:[%s389 + $0x51] sm:$0xff]
      %v404 = vld [vmem:[%s389 + $0x61] sm:$0xff]
      %v405 = vld [vmem:[%s389 + $0x71] sm:$0xff]
      %v406 = vld [vmem:[%s389 + $0x2] sm:$0xff]
      %v407 = vld [vmem:[%s389 + $0x12] sm:$0xff]
      %v408 = vld [vmem:[%s389 + $0x22] sm:$0xff]
      %v409 = vld [vmem:[%s389 + $0x32] sm:$0xff]
      %v410 = vld [vmem:[%s389 + $0x42] sm:$0xff]
      %v411 = vld [vmem:[%s389 + $0x52] sm:$0xff]
      %v412 = vld [vmem:[%s389 + $0x62] sm:$0xff]
      %v413 = vld [vmem:[%s389 + $0x72] sm:$0xff]
      %422 = vrot.lane.b32.xlu0 %v349, 4
      %v423 = vpop.permute.xlu0 %422
      %424 = vrot.lane.b32.xlu0 %v350, 4
      %v425 = vpop.permute.xlu0 %424
      %426 = vrot.lane.b32.xlu0 %v351, 4
      %v427 = vpop.permute.xlu0 %426
      %428 = vrot.lane.b32.xlu0 %v352, 4
      %v429 = vpop.permute.xlu0 %428
      %430 = vrot.lane.b32.xlu0 %v353, 4
      %v431 = vpop.permute.xlu0 %430
      %432 = vrot.lane.b32.xlu0 %v354, 4
      %v433 = vpop.permute.xlu0 %432
      %434 = vrot.lane.b32.xlu0 %v355, 4
      %v435 = vpop.permute.xlu0 %434
      %436 = vrot.lane.b32.xlu0 %v356, 4
      %v437 = vpop.permute.xlu0 %436
      %454 = vrot.lane.b32.xlu0 %v357, 8
      %v455 = vpop.permute.xlu0 %454
      %456 = vrot.lane.b32.xlu0 %v358, 8
      %v457 = vpop.permute.xlu0 %456
      %458 = vrot.lane.b32.xlu0 %v359, 8
      %v459 = vpop.permute.xlu0 %458
      %460 = vrot.lane.b32.xlu0 %v360, 8
      %v461 = vpop.permute.xlu0 %460
      %462 = vrot.lane.b32.xlu0 %v361, 8
      %v463 = vpop.permute.xlu0 %462
      %464 = vrot.lane.b32.xlu0 %v362, 8
      %v465 = vpop.permute.xlu0 %464
      %466 = vrot.lane.b32.xlu0 %v363, 8
      %v467 = vpop.permute.xlu0 %466
      %468 = vrot.lane.b32.xlu0 %v364, 8
      %v469 = vpop.permute.xlu0 %468
      %486 = vrot.lane.b32.xlu0 %v365, 12
      %v487 = vpop.permute.xlu0 %486
      %488 = vrot.lane.b32.xlu0 %v366, 12
      %v489 = vpop.permute.xlu0 %488
      %490 = vrot.lane.b32.xlu0 %v367, 12
      %v491 = vpop.permute.xlu0 %490
      %492 = vrot.lane.b32.xlu0 %v368, 12
      %v493 = vpop.permute.xlu0 %492
      %494 = vrot.lane.b32.xlu0 %v369, 12
      %v495 = vpop.permute.xlu0 %494
      %496 = vrot.lane.b32.xlu0 %v370, 12
      %v497 = vpop.permute.xlu0 %496
      %498 = vrot.lane.b32.xlu0 %v371, 12
      %v499 = vpop.permute.xlu0 %498
      %500 = vrot.lane.b32.xlu0 %v372, 12
      %v501 = vpop.permute.xlu0 %500
      %518 = vrot.lane.b32.xlu0 %v373, 16
      %v519 = vpop.permute.xlu0 %518
      %520 = vrot.lane.b32.xlu0 %v374, 16
      %v521 = vpop.permute.xlu0 %520
      %522 = vrot.lane.b32.xlu0 %v375, 16
      %v523 = vpop.permute.xlu0 %522
      %524 = vrot.lane.b32.xlu0 %v376, 16
      %v525 = vpop.permute.xlu0 %524
      %526 = vrot.lane.b32.xlu0 %v377, 16
      %v527 = vpop.permute.xlu0 %526
      %528 = vrot.lane.b32.xlu0 %v378, 16
      %v529 = vpop.permute.xlu0 %528
      %530 = vrot.lane.b32.xlu0 %v379, 16
      %v531 = vpop.permute.xlu0 %530
      %532 = vrot.lane.b32.xlu0 %v380, 16
      %v533 = vpop.permute.xlu0 %532
      %550 = vrot.lane.b32.xlu0 %v381, 20
      %v551 = vpop.permute.xlu0 %550
      %552 = vrot.lane.b32.xlu0 %v382, 20
      %v553 = vpop.permute.xlu0 %552
      %554 = vrot.lane.b32.xlu0 %v383, 20
      %v555 = vpop.permute.xlu0 %554
      %556 = vrot.lane.b32.xlu0 %v384, 20
      %v557 = vpop.permute.xlu0 %556
      %558 = vrot.lane.b32.xlu0 %v385, 20
      %v559 = vpop.permute.xlu0 %558
      %560 = vrot.lane.b32.xlu0 %v386, 20
      %v561 = vpop.permute.xlu0 %560
      %562 = vrot.lane.b32.xlu0 %v387, 20
      %v563 = vpop.permute.xlu0 %562
      %564 = vrot.lane.b32.xlu0 %v388, 20
      %v565 = vpop.permute.xlu0 %564
      %582 = vrot.lane.b32.xlu0 %v390, 24
      %v583 = vpop.permute.xlu0 %582
      %584 = vrot.lane.b32.xlu0 %v391, 24
      %v585 = vpop.permute.xlu0 %584
      %586 = vrot.lane.b32.xlu0 %v392, 24
      %v587 = vpop.permute.xlu0 %586
      %588 = vrot.lane.b32.xlu0 %v393, 24
      %v589 = vpop.permute.xlu0 %588
      %590 = vrot.lane.b32.xlu0 %v394, 24
      %v591 = vpop.permute.xlu0 %590
      %592 = vrot.lane.b32.xlu0 %v395, 24
      %v593 = vpop.permute.xlu0 %592
      %594 = vrot.lane.b32.xlu0 %v396, 24
      %v595 = vpop.permute.xlu0 %594
      %596 = vrot.lane.b32.xlu0 %v397, 24
      %v597 = vpop.permute.xlu0 %596
      %614 = vrot.lane.b32.xlu0 %v398, 28
      %v615 = vpop.permute.xlu0 %614
      %616 = vrot.lane.b32.xlu0 %v399, 28
      %v617 = vpop.permute.xlu0 %616
      %618 = vrot.lane.b32.xlu0 %v400, 28
      %v619 = vpop.permute.xlu0 %618
      %620 = vrot.lane.b32.xlu0 %v401, 28
      %v621 = vpop.permute.xlu0 %620
      %622 = vrot.lane.b32.xlu0 %v402, 28
      %v623 = vpop.permute.xlu0 %622
      %624 = vrot.lane.b32.xlu0 %v403, 28
      %v625 = vpop.permute.xlu0 %624
      %626 = vrot.lane.b32.xlu0 %v404, 28
      %v627 = vpop.permute.xlu0 %626
      %628 = vrot.lane.b32.xlu0 %v405, 28
      %v629 = vpop.permute.xlu0 %628
      %646 = vrot.lane.b32.xlu0 %v406, 32
      %v647 = vpop.permute.xlu0 %646
      %648 = vrot.lane.b32.xlu0 %v407, 32
      %v649 = vpop.permute.xlu0 %648
      %650 = vrot.lane.b32.xlu0 %v408, 32
      %v651 = vpop.permute.xlu0 %650
      %652 = vrot.lane.b32.xlu0 %v409, 32
      %v653 = vpop.permute.xlu0 %652
      %654 = vrot.lane.b32.xlu0 %v410, 32
      %v655 = vpop.permute.xlu0 %654
      %656 = vrot.lane.b32.xlu0 %v411, 32
      %v657 = vpop.permute.xlu0 %656
      %658 = vrot.lane.b32.xlu0 %v412, 32
      %v659 = vpop.permute.xlu0 %658
      %660 = vrot.lane.b32.xlu0 %v413, 32
      %v661 = vpop.permute.xlu0 %660
      %v670 = vsel %vm310, %v341, %v423
      %v671 = vsel %vm310, %v342, %v425
      %v672 = vsel %vm310, %v343, %v427
      %v673 = vsel %vm310, %v344, %v429
      %v674 = vsel %vm310, %v345, %v431
      %v675 = vsel %vm310, %v346, %v433
      %v676 = vsel %vm310, %v347, %v435
      %v677 = vsel %vm310, %v348, %v437
      %vm678 = vcmask 64512
      %v679 = vsel %vm678, %v670, %v455
      %v680 = vsel %vm678, %v671, %v457
      %v681 = vsel %vm678, %v672, %v459
      %v682 = vsel %vm678, %v673, %v461
      %v683 = vsel %vm678, %v674, %v463
      %v684 = vsel %vm678, %v675, %v465
      %v685 = vsel %vm678, %v676, %v467
      %v686 = vsel %vm678, %v677, %v469
      %vm687 = vcmask 97280
      %v688 = vsel %vm687, %v679, %v487
      %v689 = vsel %vm687, %v680, %v489
      %v690 = vsel %vm687, %v681, %v491
      %v691 = vsel %vm687, %v682, %v493
      %v692 = vsel %vm687, %v683, %v495
      %v693 = vsel %vm687, %v684, %v497
      %v694 = vsel %vm687, %v685, %v499
      %v695 = vsel %vm687, %v686, %v501
      %vm696 = vcmask 130048
      %v697 = vsel %vm696, %v688, %v519
      %v698 = vsel %vm696, %v689, %v521
      %v699 = vsel %vm696, %v690, %v523
      %v700 = vsel %vm696, %v691, %v525
      %v701 = vsel %vm696, %v692, %v527
      %v702 = vsel %vm696, %v693, %v529
      %v703 = vsel %vm696, %v694, %v531
      %v704 = vsel %vm696, %v695, %v533
      %vm705 = vcmask 162816
      %v706 = vsel %vm705, %v697, %v551
      %v707 = vsel %vm705, %v698, %v553
      %v708 = vsel %vm705, %v699, %v555
      %v709 = vsel %vm705, %v700, %v557
      %v710 = vsel %vm705, %v701, %v559
      %v711 = vsel %vm705, %v702, %v561
      %v712 = vsel %vm705, %v703, %v563
      %v713 = vsel %vm705, %v704, %v565
      %vm714 = vcmask 195584
      %v715 = vsel %vm714, %v706, %v583
      %v716 = vsel %vm714, %v707, %v585
      %v717 = vsel %vm714, %v708, %v587
      %v718 = vsel %vm714, %v709, %v589
      %v719 = vsel %vm714, %v710, %v591
      %v720 = vsel %vm714, %v711, %v593
      %v721 = vsel %vm714, %v712, %v595
      %v722 = vsel %vm714, %v713, %v597
      %vm723 = vcmask 228352
      %v724 = vsel %vm723, %v715, %v615
      %v725 = vsel %vm723, %v716, %v617
      %v726 = vsel %vm723, %v717, %v619
      %v727 = vsel %vm723, %v718, %v621
      %v728 = vsel %vm723, %v719, %v623
      %v729 = vsel %vm723, %v720, %v625
      %v730 = vsel %vm723, %v721, %v627
      %v731 = vsel %vm723, %v722, %v629
      %vm732 = vcmask 261120
      %v733 = vsel %vm732, %v724, %v647
      %v734 = vsel %vm732, %v725, %v649
      %v735 = vsel %vm732, %v726, %v651
      %v736 = vsel %vm732, %v727, %v653
      %v737 = vsel %vm732, %v728, %v655
      %v738 = vsel %vm732, %v729, %v657
      %v739 = vsel %vm732, %v730, %v659
      %v740 = vsel %vm732, %v731, %v661
      %v741 = vld [vmem:[%s1] sm:$0xff]
      %v742 = vld [vmem:[%s1 + $0x8] sm:$0xff]
      %v743 = vld [vmem:[%s1 + $0x10] sm:$0xff]
      %v744 = vld [vmem:[%s1 + $0x18] sm:$0xff]
      %v745 = vld [vmem:[%s1 + $0x20] sm:$0xf]
      %v746 = vld [vmem:[%s2] sm:$0x1]
      %v748 = vlaneseq
      %v749 = vshrl.u32 %v748, 7
      %v750 = vsub.s32 0, %v749
      %v751 = vrot.slane %v746, %v750
      %vm753 = vcmask 293888
      %v755 = vsel %vm753, %v733, 0
      %v758 = vsel %vm753, %v734, 0
      %v761 = vsel %vm753, %v735, 0
      %v764 = vsel %vm753, %v736, 0
      %v767 = vsel %vm753, %v737, 0
      %v770 = vsel %vm753, %v738, 0
      %v773 = vsel %vm753, %v739, 0
      %v776 = vsel %vm753, %v740, 0
      %vm778 = vcmask 1043456
      %v780 = vsel %vm778, %v745, 0
      %782 = vmatprep.subr.mxu0 0.0
      %783 = vmatpush1.msra.mxu0 %v741
      %784 = vmatprep.subr.mxu0 0.0
      %785 = vmatpush1.msra.mxu0 %v742
      %786 = vmatprep.subr.mxu0 0.0
      %787 = vmatpush1.msra.mxu0 %v743
      %788 = vmatprep.subr.mxu0 0.0
      %789 = vmatpush1.msra.mxu0 %v744
      %790 = vmatprep.subr.mxu0 0.0
      %791 = vmatpush1.msra.mxu0 %v780
      %792 = vmatprep.subr.mxu0 0.0
      %793 = vmatpush1.msra.mxu0 0.0
      %794 = vmatprep.subr.mxu0 0.0
      %795 = vmatpush1.msra.mxu0 0.0
      %796 = vmatprep.subr.mxu0 0.0
      %797 = vmatpush1.msra.mxu0 0.0
      %798 = vmatprep.subr.mxu0 0.0
      %799 = vmatpush1.msra.mxu0 0.0
      %800 = vmatprep.subr.mxu0 0.0
      %801 = vmatpush1.msra.mxu0 0.0
      %802 = vmatprep.subr.mxu0 0.0
      %803 = vmatpush1.msra.mxu0 0.0
      %804 = vmatprep.subr.mxu0 0.0
      %805 = vmatpush1.msra.mxu0 0.0
      %806 = vmatprep.subr.mxu0 0.0
      %807 = vmatpush1.msra.mxu0 0.0
      %808 = vmatprep.subr.mxu0 0.0
      %809 = vmatpush1.msra.mxu0 0.0
      %810 = vmatprep.subr.mxu0 0.0
      %811 = vmatpush1.msra.mxu0 0.0
      %812 = vmatprep.subr.mxu0 0.0
      %813 = vmatpush1.msra.mxu0 0.0
      %814 = vmatprep.subr.mxu0 0.0
      %815 = vmatpush1.msra.mxu0 0.0
      %816 = vmatprep.subr.mxu0 0.0
      %817 = vmatpush1.msra.mxu0 0.0
      %818 = vmatprep.subr.mxu0 0.0
      %819 = vmatpush1.msra.mxu0 0.0
      %820 = vmatprep.subr.mxu0 0.0
      %821 = vmatpush1.msra.mxu0 0.0
      %822 = vmatprep.subr.mxu0 0.0
      %823 = vmatpush1.msra.mxu0 0.0
      %824 = vmatprep.subr.mxu0 0.0
      %825 = vmatpush1.msra.mxu0 0.0
      %826 = vmatprep.subr.mxu0 0.0
      %827 = vmatpush1.msra.mxu0 0.0
      %828 = vmatprep.subr.mxu0 0.0
      %829 = vmatpush1.msra.mxu0 0.0
      %830 = vmatprep.subr.mxu0 0.0
      %831 = vmatpush1.msra.mxu0 0.0
      %832 = vmatprep.subr.mxu0 0.0
      %833 = vmatpush1.msra.mxu0 0.0
      %834 = vmatprep.subr.mxu0 0.0
      %835 = vmatpush1.msra.mxu0 0.0
      %836 = vmatprep.subr.mxu0 0.0
      %837 = vmatpush1.msra.mxu0 0.0
      %838 = vmatprep.subr.mxu0 0.0
      %839 = vmatpush1.msra.mxu0 0.0
      %840 = vmatprep.subr.mxu0 0.0
      %841 = vmatpush1.msra.mxu0 0.0
      %842 = vmatprep.subr.mxu0 0.0
      %843 = vmatpush1.msra.mxu0 0.0
      %844 = vmatprep.subr.mxu0 0.0
      %845 = vmatpush1.msra.mxu0 0.0
      %846 = vmatprep.mubr.f32.mxu0 0.0
      %847 = vmatmul.mubr.f32.gmra.mrb[0].mxu0 %v755
      %v848 = vpop.f32.mrb[0].mxu0
      %v849 = vadd.f32 %v751, %v848
      %v850 = vpop.f32.mrb[0].mxu0
      %851 = vmatprep.mubr.f32.mxu0 0.0
      %852 = vmatmul.mubr.f32.gmra.mrb[0].mxu0 %v758
      %v853 = vpop.f32.mrb[0].mxu0
      %v854 = vadd.f32 %v751, %v853
      %v855 = vpop.f32.mrb[0].mxu0
      %856 = vmatprep.mubr.f32.mxu0 0.0
      %857 = vmatmul.mubr.f32.gmra.mrb[0].mxu0 %v761
      %v858 = vpop.f32.mrb[0].mxu0
      %v859 = vadd.f32 %v751, %v858
      %v860 = vpop.f32.mrb[0].mxu0
      %861 = vmatprep.mubr.f32.mxu0 0.0
      %862 = vmatmul.mubr.f32.gmra.mrb[0].mxu0 %v764
      %v863 = vpop.f32.mrb[0].mxu0
      %v864 = vadd.f32 %v751, %v863
      %v865 = vpop.f32.mrb[0].mxu0
      %866 = vmatprep.mubr.f32.mxu0 0.0
      %867 = vmatmul.mubr.f32.gmra.mrb[0].mxu0 %v767
      %v868 = vpop.f32.mrb[0].mxu0
      %v869 = vadd.f32 %v751, %v868
      %v870 = vpop.f32.mrb[0].mxu0
      %871 = vmatprep.mubr.f32.mxu0 0.0
      %872 = vmatmul.mubr.f32.gmra.mrb[0].mxu0 %v770
      %v873 = vpop.f32.mrb[0].mxu0
      %v874 = vadd.f32 %v751, %v873
      %v875 = vpop.f32.mrb[0].mxu0
      %876 = vmatprep.mubr.f32.mxu0 0.0
      %877 = vmatmul.mubr.f32.gmra.mrb[0].mxu0 %v773
      %v878 = vpop.f32.mrb[0].mxu0
      %v879 = vadd.f32 %v751, %v878
      %v880 = vpop.f32.mrb[0].mxu0
      %881 = vmatprep.mubr.f32.mxu0 0.0
      %882 = vmatmul.mubr.f32.gmra.mrb[0].mxu0 %v776
      %v883 = vpop.f32.mrb[0].mxu0
      %v884 = vadd.f32 %v751, %v883
      %v885 = vpop.f32.mrb[0].mxu0
      %886 = vdwg.mxu0
      %vm887 = vcmp.ge.f32.partialorder %v849, 0.0
      %vm888 = vcmp.ge.f32.partialorder %v854, 0.0
      %vm889 = vcmp.ge.f32.partialorder %v859, 0.0
      %vm890 = vcmp.ge.f32.partialorder %v864, 0.0
      %vm891 = vcmp.ge.f32.partialorder %v869, 0.0
      %vm892 = vcmp.ge.f32.partialorder %v874, 0.0
      %vm893 = vcmp.ge.f32.partialorder %v879, 0.0
      %vm894 = vcmp.ge.f32.partialorder %v884, 0.0
      %v895 = vmul.f32 %v849, 0.01
      %v896 = vmul.f32 %v854, 0.01
      %v897 = vmul.f32 %v859, 0.01
      %v898 = vmul.f32 %v864, 0.01
      %v899 = vmul.f32 %v869, 0.01
      %v900 = vmul.f32 %v874, 0.01
      %v901 = vmul.f32 %v879, 0.01
      %v902 = vmul.f32 %v884, 0.01
      %v903 = vsel %vm887, %v849, %v895
      %v904 = vsel %vm888, %v854, %v896
      %v905 = vsel %vm889, %v859, %v897
      %v906 = vsel %vm890, %v864, %v898
      %v907 = vsel %vm891, %v869, %v899
      %v908 = vsel %vm892, %v874, %v900
      %v909 = vsel %vm893, %v879, %v901
      %v910 = vsel %vm894, %v884, %v902
      %911 = vst.msk [vmem:[#allocation3] sm:$0xff] %vm678, 0.0
      %vm912 = vcmask 58368
      %913 = vst.msk [vmem:[#allocation3 + $0x8] sm:$0x3] %vm912, 0.0
      %914 = vst.msk [vmem:[#allocation3 + $0x10] sm:$0xff] %vm678, 0.0
      %915 = vst.msk [vmem:[#allocation3 + $0x18] sm:$0x3] %vm912, 0.0
      %916 = vst.msk [vmem:[#allocation3 + $0x20] sm:$0xff] %vm678, 0.0
      %917 = vst.msk [vmem:[#allocation3 + $0x28] sm:$0x3] %vm912, 0.0
      %918 = vst.msk [vmem:[#allocation3 + $0x30] sm:$0xff] %vm678, 0.0
      %919 = vst.msk [vmem:[#allocation3 + $0x38] sm:$0x3] %vm912, 0.0
      %920 = vst.msk [vmem:[#allocation3 + $0x40] sm:$0xff] %vm678, 0.0
      %921 = vst.msk [vmem:[#allocation3 + $0x48] sm:$0x3] %vm912, 0.0
      %922 = vst.msk [vmem:[#allocation3 + $0x50] sm:$0xff] %vm678, 0.0
      %923 = vst.msk [vmem:[#allocation3 + $0x58] sm:$0x3] %vm912, 0.0
      %924 = vst.msk [vmem:[#allocation3 + $0x60] sm:$0xff] %vm678, 0.0
      %925 = vst.msk [vmem:[#allocation3 + $0x68] sm:$0x3] %vm912, 0.0
      %926 = vst.msk [vmem:[#allocation3 + $0x70] sm:$0xff] %vm678, 0.0
      %927 = vst.msk [vmem:[#allocation3 + $0x78] sm:$0x3] %vm912, 0.0
      %928 = vst.msk [vmem:[#allocation3 + $0x80] sm:$0xff] %vm678, 0.0
      %929 = vst.msk [vmem:[#allocation3 + $0x88] sm:$0x3] %vm912, 0.0
      %930 = vst.msk [vmem:[#allocation3 + $0x90] sm:$0xff] %vm678, 0.0
      %931 = vst.msk [vmem:[#allocation3 + $0x98] sm:$0x3] %vm912, 0.0
      %s932 = scalar_lea.vmem [#allocation3], 16
      %933 = vst.msk [vmem:[%s932 + $0x1] sm:$0xff] %vm678, %v903
      %934 = vst.msk [vmem:[%s932 + $0x11] sm:$0xff] %vm678, %v904
      %935 = vst.msk [vmem:[%s932 + $0x21] sm:$0xff] %vm678, %v905
      %936 = vst.msk [vmem:[%s932 + $0x31] sm:$0xff] %vm678, %v906
      %937 = vst.msk [vmem:[%s932 + $0x41] sm:$0xff] %vm678, %v907
      %938 = vst.msk [vmem:[%s932 + $0x51] sm:$0xff] %vm678, %v908
      %939 = vst.msk [vmem:[%s932 + $0x61] sm:$0xff] %vm678, %v909
      %940 = vst.msk [vmem:[%s932 + $0x71] sm:$0xff] %vm678, %v910
      %v941 = vld [vmem:[#allocation3] sm:$0xff]
      %v942 = vld [vmem:[#allocation3 + $0x10] sm:$0xff]
      %v943 = vld [vmem:[#allocation3 + $0x20] sm:$0xff]
      %v944 = vld [vmem:[#allocation3 + $0x30] sm:$0xff]
      %v945 = vld [vmem:[#allocation3 + $0x40] sm:$0xff]
      %v946 = vld [vmem:[#allocation3 + $0x50] sm:$0xff]
      %v947 = vld [vmem:[#allocation3 + $0x60] sm:$0xff]
      %v948 = vld [vmem:[#allocation3 + $0x70] sm:$0xff]
      %v949 = vld [vmem:[#allocation3 + $0x1] sm:$0xff]
      %v950 = vld [vmem:[#allocation3 + $0x11] sm:$0xff]
      %v951 = vld [vmem:[#allocation3 + $0x21] sm:$0xff]
      %v952 = vld [vmem:[#allocation3 + $0x31] sm:$0xff]
      %v953 = vld [vmem:[#allocation3 + $0x41] sm:$0xff]
      %v954 = vld [vmem:[#allocation3 + $0x51] sm:$0xff]
      %v955 = vld [vmem:[#allocation3 + $0x61] sm:$0xff]
      %v956 = vld [vmem:[#allocation3 + $0x71] sm:$0xff]
      %v957 = vld [vmem:[#allocation3 + $0x2] sm:$0xff]
      %v958 = vld [vmem:[#allocation3 + $0x12] sm:$0xff]
      %v959 = vld [vmem:[#allocation3 + $0x22] sm:$0xff]
      %v960 = vld [vmem:[#allocation3 + $0x32] sm:$0xff]
      %v961 = vld [vmem:[#allocation3 + $0x42] sm:$0xff]
      %v962 = vld [vmem:[#allocation3 + $0x52] sm:$0xff]
      %v963 = vld [vmem:[#allocation3 + $0x62] sm:$0xff]
      %v964 = vld [vmem:[#allocation3 + $0x72] sm:$0xff]
      %v965 = vld [vmem:[%s932] sm:$0xff]
      %v966 = vld [vmem:[%s932 + $0x10] sm:$0xff]
      %v967 = vld [vmem:[%s932 + $0x20] sm:$0xff]
      %v968 = vld [vmem:[%s932 + $0x30] sm:$0xff]
      %v969 = vld [vmem:[%s932 + $0x40] sm:$0xff]
      %v970 = vld [vmem:[%s932 + $0x50] sm:$0xff]
      %v971 = vld [vmem:[%s932 + $0x60] sm:$0xff]
      %v972 = vld [vmem:[%s932 + $0x70] sm:$0xff]
      %v973 = vld [vmem:[%s932 + $0x1] sm:$0xff]
      %v974 = vld [vmem:[%s932 + $0x11] sm:$0xff]
      %v975 = vld [vmem:[%s932 + $0x21] sm:$0xff]
      %v976 = vld [vmem:[%s932 + $0x31] sm:$0xff]
      %v977 = vld [vmem:[%s932 + $0x41] sm:$0xff]
      %v978 = vld [vmem:[%s932 + $0x51] sm:$0xff]
      %v979 = vld [vmem:[%s932 + $0x61] sm:$0xff]
      %v980 = vld [vmem:[%s932 + $0x71] sm:$0xff]
      %v981 = vld [vmem:[%s932 + $0x2] sm:$0xff]
      %v982 = vld [vmem:[%s932 + $0x12] sm:$0xff]
      %v983 = vld [vmem:[%s932 + $0x22] sm:$0xff]
      %v984 = vld [vmem:[%s932 + $0x32] sm:$0xff]
      %v985 = vld [vmem:[%s932 + $0x42] sm:$0xff]
      %v986 = vld [vmem:[%s932 + $0x52] sm:$0xff]
      %v987 = vld [vmem:[%s932 + $0x62] sm:$0xff]
      %v988 = vld [vmem:[%s932 + $0x72] sm:$0xff]
      %s989 = scalar_lea.vmem [#allocation3], 32
      %v990 = vld [vmem:[%s989] sm:$0xff]
      %v991 = vld [vmem:[%s989 + $0x10] sm:$0xff]
      %v992 = vld [vmem:[%s989 + $0x20] sm:$0xff]
      %v993 = vld [vmem:[%s989 + $0x30] sm:$0xff]
      %v994 = vld [vmem:[%s989 + $0x40] sm:$0xff]
      %v995 = vld [vmem:[%s989 + $0x50] sm:$0xff]
      %v996 = vld [vmem:[%s989 + $0x60] sm:$0xff]
      %v997 = vld [vmem:[%s989 + $0x70] sm:$0xff]
      %v998 = vld [vmem:[%s989 + $0x1] sm:$0xff]
      %v999 = vld [vmem:[%s989 + $0x11] sm:$0xff]
      %v1000 = vld [vmem:[%s989 + $0x21] sm:$0xff]
      %v1001 = vld [vmem:[%s989 + $0x31] sm:$0xff]
      %v1002 = vld [vmem:[%s989 + $0x41] sm:$0xff]
      %v1003 = vld [vmem:[%s989 + $0x51] sm:$0xff]
      %v1004 = vld [vmem:[%s989 + $0x61] sm:$0xff]
      %v1005 = vld [vmem:[%s989 + $0x71] sm:$0xff]
      %v1006 = vld [vmem:[%s989 + $0x2] sm:$0xff]
      %v1007 = vld [vmem:[%s989 + $0x12] sm:$0xff]
      %v1008 = vld [vmem:[%s989 + $0x22] sm:$0xff]
      %v1009 = vld [vmem:[%s989 + $0x32] sm:$0xff]
      %v1010 = vld [vmem:[%s989 + $0x42] sm:$0xff]
      %v1011 = vld [vmem:[%s989 + $0x52] sm:$0xff]
      %v1012 = vld [vmem:[%s989 + $0x62] sm:$0xff]
      %v1013 = vld [vmem:[%s989 + $0x72] sm:$0xff]
      %1022 = vrot.lane.b32.xlu0 %v949, 8
      %v1023 = vpop.permute.xlu0 %1022
      %1024 = vrot.lane.b32.xlu0 %v950, 8
      %v1025 = vpop.permute.xlu0 %1024
      %1026 = vrot.lane.b32.xlu0 %v951, 8
      %v1027 = vpop.permute.xlu0 %1026
      %1028 = vrot.lane.b32.xlu0 %v952, 8
      %v1029 = vpop.permute.xlu0 %1028
      %1030 = vrot.lane.b32.xlu0 %v953, 8
      %v1031 = vpop.permute.xlu0 %1030
      %1032 = vrot.lane.b32.xlu0 %v954, 8
      %v1033 = vpop.permute.xlu0 %1032
      %1034 = vrot.lane.b32.xlu0 %v955, 8
      %v1035 = vpop.permute.xlu0 %1034
      %1036 = vrot.lane.b32.xlu0 %v956, 8
      %v1037 = vpop.permute.xlu0 %1036
      %1054 = vrot.lane.b32.xlu0 %v957, 16
      %v1055 = vpop.permute.xlu0 %1054
      %1056 = vrot.lane.b32.xlu0 %v958, 16
      %v1057 = vpop.permute.xlu0 %1056
      %1058 = vrot.lane.b32.xlu0 %v959, 16
      %v1059 = vpop.permute.xlu0 %1058
      %1060 = vrot.lane.b32.xlu0 %v960, 16
      %v1061 = vpop.permute.xlu0 %1060
      %1062 = vrot.lane.b32.xlu0 %v961, 16
      %v1063 = vpop.permute.xlu0 %1062
      %1064 = vrot.lane.b32.xlu0 %v962, 16
      %v1065 = vpop.permute.xlu0 %1064
      %1066 = vrot.lane.b32.xlu0 %v963, 16
      %v1067 = vpop.permute.xlu0 %1066
      %1068 = vrot.lane.b32.xlu0 %v964, 16
      %v1069 = vpop.permute.xlu0 %1068
      %1086 = vrot.lane.b32.xlu0 %v965, 24
      %v1087 = vpop.permute.xlu0 %1086
      %1088 = vrot.lane.b32.xlu0 %v966, 24
      %v1089 = vpop.permute.xlu0 %1088
      %1090 = vrot.lane.b32.xlu0 %v967, 24
      %v1091 = vpop.permute.xlu0 %1090
      %1092 = vrot.lane.b32.xlu0 %v968, 24
      %v1093 = vpop.permute.xlu0 %1092
      %1094 = vrot.lane.b32.xlu0 %v969, 24
      %v1095 = vpop.permute.xlu0 %1094
      %1096 = vrot.lane.b32.xlu0 %v970, 24
      %v1097 = vpop.permute.xlu0 %1096
      %1098 = vrot.lane.b32.xlu0 %v971, 24
      %v1099 = vpop.permute.xlu0 %1098
      %1100 = vrot.lane.b32.xlu0 %v972, 24
      %v1101 = vpop.permute.xlu0 %1100
      %1118 = vrot.lane.b32.xlu0 %v973, 32
      %v1119 = vpop.permute.xlu0 %1118
      %1120 = vrot.lane.b32.xlu0 %v974, 32
      %v1121 = vpop.permute.xlu0 %1120
      %1122 = vrot.lane.b32.xlu0 %v975, 32
      %v1123 = vpop.permute.xlu0 %1122
      %1124 = vrot.lane.b32.xlu0 %v976, 32
      %v1125 = vpop.permute.xlu0 %1124
      %1126 = vrot.lane.b32.xlu0 %v977, 32
      %v1127 = vpop.permute.xlu0 %1126
      %1128 = vrot.lane.b32.xlu0 %v978, 32
      %v1129 = vpop.permute.xlu0 %1128
      %1130 = vrot.lane.b32.xlu0 %v979, 32
      %v1131 = vpop.permute.xlu0 %1130
      %1132 = vrot.lane.b32.xlu0 %v980, 32
      %v1133 = vpop.permute.xlu0 %1132
      %1150 = vrot.lane.b32.xlu0 %v981, 40
      %v1151 = vpop.permute.xlu0 %1150
      %1152 = vrot.lane.b32.xlu0 %v982, 40
      %v1153 = vpop.permute.xlu0 %1152
      %1154 = vrot.lane.b32.xlu0 %v983, 40
      %v1155 = vpop.permute.xlu0 %1154
      %1156 = vrot.lane.b32.xlu0 %v984, 40
      %v1157 = vpop.permute.xlu0 %1156
      %1158 = vrot.lane.b32.xlu0 %v985, 40
      %v1159 = vpop.permute.xlu0 %1158
      %1160 = vrot.lane.b32.xlu0 %v986, 40
      %v1161 = vpop.permute.xlu0 %1160
      %1162 = vrot.lane.b32.xlu0 %v987, 40
      %v1163 = vpop.permute.xlu0 %1162
      %1164 = vrot.lane.b32.xlu0 %v988, 40
      %v1165 = vpop.permute.xlu0 %1164
      %1182 = vrot.lane.b32.xlu0 %v990, 48
      %v1183 = vpop.permute.xlu0 %1182
      %1184 = vrot.lane.b32.xlu0 %v991, 48
      %v1185 = vpop.permute.xlu0 %1184
      %1186 = vrot.lane.b32.xlu0 %v992, 48
      %v1187 = vpop.permute.xlu0 %1186
      %1188 = vrot.lane.b32.xlu0 %v993, 48
      %v1189 = vpop.permute.xlu0 %1188
      %1190 = vrot.lane.b32.xlu0 %v994, 48
      %v1191 = vpop.permute.xlu0 %1190
      %1192 = vrot.lane.b32.xlu0 %v995, 48
      %v1193 = vpop.permute.xlu0 %1192
      %1194 = vrot.lane.b32.xlu0 %v996, 48
      %v1195 = vpop.permute.xlu0 %1194
      %1196 = vrot.lane.b32.xlu0 %v997, 48
      %v1197 = vpop.permute.xlu0 %1196
      %1214 = vrot.lane.b32.xlu0 %v998, 56
      %v1215 = vpop.permute.xlu0 %1214
      %1216 = vrot.lane.b32.xlu0 %v999, 56
      %v1217 = vpop.permute.xlu0 %1216
      %1218 = vrot.lane.b32.xlu0 %v1000, 56
      %v1219 = vpop.permute.xlu0 %1218
      %1220 = vrot.lane.b32.xlu0 %v1001, 56
      %v1221 = vpop.permute.xlu0 %1220
      %1222 = vrot.lane.b32.xlu0 %v1002, 56
      %v1223 = vpop.permute.xlu0 %1222
      %1224 = vrot.lane.b32.xlu0 %v1003, 56
      %v1225 = vpop.permute.xlu0 %1224
      %1226 = vrot.lane.b32.xlu0 %v1004, 56
      %v1227 = vpop.permute.xlu0 %1226
      %1228 = vrot.lane.b32.xlu0 %v1005, 56
      %v1229 = vpop.permute.xlu0 %1228
      %1246 = vrot.lane.b32.xlu0 %v1006, 64
      %v1247 = vpop.permute.xlu0 %1246
      %1248 = vrot.lane.b32.xlu0 %v1007, 64
      %v1249 = vpop.permute.xlu0 %1248
      %1250 = vrot.lane.b32.xlu0 %v1008, 64
      %v1251 = vpop.permute.xlu0 %1250
      %1252 = vrot.lane.b32.xlu0 %v1009, 64
      %v1253 = vpop.permute.xlu0 %1252
      %1254 = vrot.lane.b32.xlu0 %v1010, 64
      %v1255 = vpop.permute.xlu0 %1254
      %1256 = vrot.lane.b32.xlu0 %v1011, 64
      %v1257 = vpop.permute.xlu0 %1256
      %1258 = vrot.lane.b32.xlu0 %v1012, 64
      %v1259 = vpop.permute.xlu0 %1258
      %1260 = vrot.lane.b32.xlu0 %v1013, 64
      %v1261 = vpop.permute.xlu0 %1260
      %v1270 = vsel %vm678, %v941, %v1023
      %v1271 = vsel %vm678, %v942, %v1025
      %v1272 = vsel %vm678, %v943, %v1027
      %v1273 = vsel %vm678, %v944, %v1029
      %v1274 = vsel %vm678, %v945, %v1031
      %v1275 = vsel %vm678, %v946, %v1033
      %v1276 = vsel %vm678, %v947, %v1035
      %v1277 = vsel %vm678, %v948, %v1037
      %v1278 = vsel %vm696, %v1270, %v1055
      %v1279 = vsel %vm696, %v1271, %v1057
      %v1280 = vsel %vm696, %v1272, %v1059
      %v1281 = vsel %vm696, %v1273, %v1061
      %v1282 = vsel %vm696, %v1274, %v1063
      %v1283 = vsel %vm696, %v1275, %v1065
      %v1284 = vsel %vm696, %v1276, %v1067
      %v1285 = vsel %vm696, %v1277, %v1069
      %v1286 = vsel %vm714, %v1278, %v1087
      %v1287 = vsel %vm714, %v1279, %v1089
      %v1288 = vsel %vm714, %v1280, %v1091
      %v1289 = vsel %vm714, %v1281, %v1093
      %v1290 = vsel %vm714, %v1282, %v1095
      %v1291 = vsel %vm714, %v1283, %v1097
      %v1292 = vsel %vm714, %v1284, %v1099
      %v1293 = vsel %vm714, %v1285, %v1101
      %v1294 = vsel %vm732, %v1286, %v1119
      %v1295 = vsel %vm732, %v1287, %v1121
      %v1296 = vsel %vm732, %v1288, %v1123
      %v1297 = vsel %vm732, %v1289, %v1125
      %v1298 = vsel %vm732, %v1290, %v1127
      %v1299 = vsel %vm732, %v1291, %v1129
      %v1300 = vsel %vm732, %v1292, %v1131
      %v1301 = vsel %vm732, %v1293, %v1133
      %vm1302 = vcmask 326656
      %v1303 = vsel %vm1302, %v1294, %v1151
      %v1304 = vsel %vm1302, %v1295, %v1153
      %v1305 = vsel %vm1302, %v1296, %v1155
      %v1306 = vsel %vm1302, %v1297, %v1157
      %v1307 = vsel %vm1302, %v1298, %v1159
      %v1308 = vsel %vm1302, %v1299, %v1161
      %v1309 = vsel %vm1302, %v1300, %v1163
      %v1310 = vsel %vm1302, %v1301, %v1165
      %vm1311 = vcmask 392192
      %v1312 = vsel %vm1311, %v1303, %v1183
      %v1313 = vsel %vm1311, %v1304, %v1185
      %v1314 = vsel %vm1311, %v1305, %v1187
      %v1315 = vsel %vm1311, %v1306, %v1189
      %v1316 = vsel %vm1311, %v1307, %v1191
      %v1317 = vsel %vm1311, %v1308, %v1193
      %v1318 = vsel %vm1311, %v1309, %v1195
      %v1319 = vsel %vm1311, %v1310, %v1197
      %vm1320 = vcmask 457728
      %v1321 = vsel %vm1320, %v1312, %v1215
      %v1322 = vsel %vm1320, %v1313, %v1217
      %v1323 = vsel %vm1320, %v1314, %v1219
      %v1324 = vsel %vm1320, %v1315, %v1221
      %v1325 = vsel %vm1320, %v1316, %v1223
      %v1326 = vsel %vm1320, %v1317, %v1225
      %v1327 = vsel %vm1320, %v1318, %v1227
      %v1328 = vsel %vm1320, %v1319, %v1229
      %vm1329 = vcmask 523264
      %v1330 = vsel %vm1329, %v1321, %v1247
      %v1331 = vsel %vm1329, %v1322, %v1249
      %v1332 = vsel %vm1329, %v1323, %v1251
      %v1333 = vsel %vm1329, %v1324, %v1253
      %v1334 = vsel %vm1329, %v1325, %v1255
      %v1335 = vsel %vm1329, %v1326, %v1257
      %v1336 = vsel %vm1329, %v1327, %v1259
      %v1337 = vsel %vm1329, %v1328, %v1261
      %v1338 = vld [vmem:[%s3] sm:$0xff]
      %v1339 = vld [vmem:[%s4] sm:$0xff]
      %1341 = vset.pattern.permute.xlu0 0
      %1342 = vperm.xlu0 %1341, %v1339
      %v1343 = vpop.permute.xlu0 %1342
      %vm1345 = vcmask 588800
      %v1347 = vsel %vm1345, %v1338, 0
      %v1350 = vsel %vm1345, %v1330, 0
      %v1353 = vsel %vm1345, %v1331, 0
      %v1356 = vsel %vm1345, %v1332, 0
      %v1359 = vsel %vm1345, %v1333, 0
      %v1362 = vsel %vm1345, %v1334, 0
      %v1365 = vsel %vm1345, %v1335, 0
      %v1368 = vsel %vm1345, %v1336, 0
      %v1371 = vsel %vm1345, %v1337, 0
      %1373 = vmatprep.subr.mxu0 0.0
      %1374 = vmatpush1.xpose.msra.mxu0 %v1350
      %1375 = vmatprep.subr.mxu0 0.0
      %1376 = vmatpush1.xpose.msra.mxu0 %v1353
      %1377 = vmatprep.subr.mxu0 0.0
      %1378 = vmatpush1.xpose.msra.mxu0 %v1356
      %1379 = vmatprep.subr.mxu0 0.0
      %1380 = vmatpush1.xpose.msra.mxu0 %v1359
      %1381 = vmatprep.subr.mxu0 0.0
      %1382 = vmatpush1.xpose.msra.mxu0 %v1362
      %1383 = vmatprep.subr.mxu0 0.0
      %1384 = vmatpush1.xpose.msra.mxu0 %v1365
      %1385 = vmatprep.subr.mxu0 0.0
      %1386 = vmatpush1.xpose.msra.mxu0 %v1368
      %1387 = vmatprep.subr.mxu0 0.0
      %1388 = vmatpush1.xpose.msra.mxu0 %v1371
      %1389 = vmatprep.subr.mxu0 0.0
      %1390 = vmatpush1.xpose.msra.mxu0 0.0
      %1391 = vmatprep.subr.mxu0 0.0
      %1392 = vmatpush1.xpose.msra.mxu0 0.0
      %1393 = vmatprep.subr.mxu0 0.0
      %1394 = vmatpush1.xpose.msra.mxu0 0.0
      %1395 = vmatprep.subr.mxu0 0.0
      %1396 = vmatpush1.xpose.msra.mxu0 0.0
      %1397 = vmatprep.subr.mxu0 0.0
      %1398 = vmatpush1.xpose.msra.mxu0 0.0
      %1399 = vmatprep.subr.mxu0 0.0
      %1400 = vmatpush1.xpose.msra.mxu0 0.0
      %1401 = vmatprep.subr.mxu0 0.0
      %1402 = vmatpush1.xpose.msra.mxu0 0.0
      %1403 = vmatprep.subr.mxu0 0.0
      %1404 = vmatpush1.xpose.msra.mxu0 0.0
      %1405 = vmatprep.subr.mxu0 0.0
      %1406 = vmatpush1.xpose.msra.mxu0 0.0
      %1407 = vmatprep.subr.mxu0 0.0
      %1408 = vmatpush1.xpose.msra.mxu0 0.0
      %1409 = vmatprep.subr.mxu0 0.0
      %1410 = vmatpush1.xpose.msra.mxu0 0.0
      %1411 = vmatprep.subr.mxu0 0.0
      %1412 = vmatpush1.xpose.msra.mxu0 0.0
      %1413 = vmatprep.subr.mxu0 0.0
      %1414 = vmatpush1.xpose.msra.mxu0 0.0
      %1415 = vmatprep.subr.mxu0 0.0
      %1416 = vmatpush1.xpose.msra.mxu0 0.0
      %1417 = vmatprep.subr.mxu0 0.0
      %1418 = vmatpush1.xpose.msra.mxu0 0.0
      %1419 = vmatprep.subr.mxu0 0.0
      %1420 = vmatpush1.xpose.msra.mxu0 0.0
      %1421 = vmatprep.subr.mxu0 0.0
      %1422 = vmatpush1.xpose.msra.mxu0 0.0
      %1423 = vmatprep.subr.mxu0 0.0
      %1424 = vmatpush1.xpose.msra.mxu0 0.0
      %1425 = vmatprep.subr.mxu0 0.0
      %1426 = vmatpush1.xpose.msra.mxu0 0.0
      %1427 = vmatprep.subr.mxu0 0.0
      %1428 = vmatpush1.xpose.msra.mxu0 0.0
      %1429 = vmatprep.subr.mxu0 0.0
      %1430 = vmatpush1.xpose.msra.mxu0 0.0
      %1431 = vmatprep.subr.mxu0 0.0
      %1432 = vmatpush1.xpose.msra.mxu0 0.0
      %1433 = vmatprep.subr.mxu0 0.0
      %1434 = vmatpush1.xpose.msra.mxu0 0.0
      %1435 = vmatprep.subr.mxu0 0.0
      %1436 = vmatpush1.xpose.msra.mxu0 0.0
      %1437 = vmatprep.mubr.f32.mxu0 0.0
      %1438 = vmatmul.mubr.f32.gmra.mrb[0].mxu0 %v1347
      %v1439 = vpop.f32.mrb[0].mxu0
      %v1440 = vadd.f32 %v1343, %v1439
      %v1441 = vpop.f32.mrb[0].mxu0
      %1442 = vdwg.mxu0
      %vm1443 = vcmp.ge.f32.partialorder %v1440, 0.0
      %v1444 = vmul.f32 %v1440, 0.01
      %v1445 = vsel %vm1443, %v1440, %v1444
      %1446 = vst.msk [vmem:[%s222] sm:$0xff] %vm1329, %v1445
      %p1447 = scmp.lt.s32.totalorder %s16, 1
      %s1448 = scalar_select %p1447, %s16, 1
      %s1449 = smul.addr %s1448, 8
      %s1450 = scalar_lea.vmem %s5, %s1449
      // Predicated region
      $region41: #{down_forward.1} parent=39 // pred_check
        %p1451 = pneg %p144
      $region42: #{down_forward.1} parent=39 // pred_check_branch
        %1453 = sbr.rel (%p1451) target = $region44
      $region43: #{down_forward.1} parent=39 // pred_region
        _
      $region44: #{down_forward.1} parent=39 // pred_fallthru
        _
    $region40: #{down_forward.1} parent=5 // pred_fallthru
      _
    %p1454 = scmp.le.s32.totalorder 2, %s11
    // Predicated region
    $region45: #{down_forward.1} parent=5 // pred_check
      %p1455 = pneg %p1454
    $region46: #{down_forward.1} parent=5 // pred_check_branch
      %1457 = sbr.rel (%p1455) target = $region48
    $region47: #{down_forward.1} parent=5 // pred_region
      %s1458 = ssub.s32 %s11, 2
      // Predicated region
      $region49: #{down_forward.1} parent=47 // pred_check
        %p1459 = pneg %p150
      $region50: #{down_forward.1} parent=47 // pred_check_branch
        %1461 = sbr.rel (%p1459) target = $region52
      $region51: #{down_forward.1} parent=47 // pred_region
        %p1462 = scmp.lt.s32.totalorder %s17, 1
        %s1463 = scalar_select %p1462, %s17, 1
        %s1464 = smul.addr %s1463, 8
        %s1465 = scalar_lea.vmem %s5, %s1464
      $region52: #{down_forward.1} parent=47 // pred_fallthru
        _
    $region48: #{down_forward.1} parent=5 // pred_fallthru
      _
  $region6: #{down_forward.1} parent=0 // loop_footer
    %s15 = sadd.s32 1, %s11
  $region7: #{down_forward.1} parent=0 // loop_footer_branch
    %10 = sbr.rel target = $region3
  $region8: #{down_forward.1} parent=0 // loop_exit
    _

</llo_original>
